<compile_context>
chip_gen: v7x
topology: tpu7x:2x2x1
jax: 0.10.0
libtpu: 0.0.40
codegen_flags: <defaults>
</compile_context>

<pallas_src>
import jax
import jax.numpy as jnp
from jax import lax
from jax.experimental import pallas as pl
from jax.experimental.pallas import tpu as pltpu


def _round_up(x, m):
    return (x + m - 1) // m * m


def _choose_tiles(n, tm, tn):
    """Clamp/align tile sizes and pick the padded batch size."""
    lim = _round_up(max(n, 1), 128)
    tm = min(_round_up(tm, 128), lim)
    tn = min(_round_up(tn, 128), lim)
    # Force divisibility between the two tiles so the common padding multiple
    # is max(tm, tn) rather than an lcm blowup for mismatched tiles.
    if tn >= tm:
        tn = (tn // tm) * tm
    else:
        tm = (tm // tn) * tn
    n_pad = _round_up(n, max(tm, tn))
    # v7x has 2 TensorCores sharded over the "parallel" row axis: make sure
    # there are at least 2 row blocks whenever the padded batch allows it.
    if n_pad // tm < 2:
        tm = n_pad // 2          # n_pad is a multiple of 128 -> tm multiple of 64
    return tm, tn, n_pad


def _triplet_tile_kernel(xr_ref, xc_ref, sqr_ref, sqc_ref, tr_ref, tc_ref,
                         ap2_ref, an2_ref):
    j = pl.program_id(1)

    # Initialize per-row accumulators (resident output blocks) on the first
    # column tile of every row tile.
    @pl.when(j == 0)
    def _init():
        ap2_ref[...] = jnp.full(ap2_ref.shape, -jnp.inf, dtype=ap2_ref.dtype)
        an2_ref[...] = jnp.full(an2_ref.shape, jnp.inf, dtype=an2_ref.dtype)

    # Gram tile on the MXU, contracting the feature dim of both operands
    # (== xr @ xc.T without materializing the transpose).
    gram = lax.dot_general(
        xr_ref[...], xc_ref[...],
        dimension_numbers=(((1,), (1,)), ((), ())),
        preferred_element_type=jnp.float32)             # (TM, TN)

    # Squared pairwise distances for this tile.  Norms are precomputed in the
    # wrapper: sqr is (TM, 1) sublane-oriented, sqc is (1, TN) lane-oriented.
    # Padded columns carry sqc = +inf -> dist2 = +inf (never the min-negative)
    # and sentinel labels -> same == False (never the max-positive), so no
    # per-tile validity mask is needed.
    dist2 = sqr_ref[...] + sqc_ref[...] - 2.0 * gram    # (TM, TN)

    same = tr_ref[...] == tc_ref[...]                   # (TM,1)==(1,TN) -> (TM,TN)

    tile_ap2 = jnp.max(jnp.where(same, dist2, -jnp.inf), axis=1, keepdims=True)
    tile_an2 = jnp.min(jnp.where(same, jnp.inf, dist2), axis=1, keepdims=True)

    ap2_ref[...] = jnp.maximum(ap2_ref[...], tile_ap2)
    an2_ref[...] = jnp.minimum(an2_ref[...], tile_an2)


def triplet_loss(inputs, targets, margin=0.0, *, tm=256, tn=512):
    """Batch-hard triplet loss (same forward semantics as the PyTorch module).

    inputs:  (N, D) float features.
    targets: (N,)   integer identity labels.
    Returns (loss, prec).
    """
    n, d = inputs.shape
    x = inputs.astype(jnp.float32)
    t = targets.astype(jnp.int32)

    tm, tn, n_pad = _choose_tiles(n, tm, tn)

    pad = n_pad - n
    if pad:
        x = jnp.pad(x, ((0, pad), (0, 0)))
        # Sentinel label: INT32_MIN never collides with real (possibly
        # negative) identity labels, so padded rows/cols are never "positives".
        t = jnp.pad(t, (0, pad), constant_values=jnp.iinfo(jnp.int32).min)

    sq = jnp.sum(x * x, axis=1)                          # (n_pad,)
    sq_row = sq.reshape(n_pad, 1)                        # sublane-oriented row norms
    # Column norms: +inf beyond the real batch so padded columns are excluded
    # from the min-negative reduction without any in-kernel masking.
    col_valid = jnp.arange(n_pad) < n
    sq_col = jnp.where(col_valid, sq, jnp.inf).reshape(1, n_pad)

    t_row = t.reshape(n_pad, 1)
    t_col = t.reshape(1, n_pad)

    grid = (n_pad // tm, n_pad // tn)

    # VMEM budget: double-buffered inputs/outputs plus ~6 full elementwise
    # intermediates of the (tm, tn) tile.  Capped at v7x's 64 MiB physical VMEM.
    vmem_est = 4 * (2 * ((tm + tn) * d + 4 * tm + 2 * tn) + 6 * tm * tn) + (2 << 20)
    vmem_limit = int(min(max(vmem_est, 32 * 1024 * 1024), 64 * 1024 * 1024))

    ap2, an2 = pl.pallas_call(
        _triplet_tile_kernel,
        grid=grid,
        in_specs=[
            pl.BlockSpec((tm, d), lambda i, j: (i, 0)),    # row feature block
            pl.BlockSpec((tn, d), lambda i, j: (j, 0)),    # col feature block
            pl.BlockSpec((tm, 1), lambda i, j: (i, 0)),    # row squared norms
            pl.BlockSpec((1, tn), lambda i, j: (0, j)),    # col squared norms (+inf pad)
            pl.BlockSpec((tm, 1), lambda i, j: (i, 0)),    # row labels
            pl.BlockSpec((1, tn), lambda i, j: (0, j)),    # col labels
        ],
        out_specs=(
            pl.BlockSpec((tm, 1), lambda i, j: (i, 0)),    # running max positive d^2
            pl.BlockSpec((tm, 1), lambda i, j: (i, 0)),    # running min negative d^2
        ),
        out_shape=(
            jax.ShapeDtypeStruct((n_pad, 1), jnp.float32),
            jax.ShapeDtypeStruct((n_pad, 1), jnp.float32),
        ),
        compiler_params=pltpu.CompilerParams(
            dimension_semantics=("parallel", "arbitrary"),
            vmem_limit_bytes=vmem_limit,
        ),
    )(x, x, sq_row, sq_col, t_row, t_col)

    ap2 = ap2[:n, 0]
    an2 = an2[:n, 0]

    # Deferred epilogue (O(N)): clamp, sqrt, hinge, mean.  sqrt and the 1e-12
    # clamp are monotone, so selections made on squared distances are unchanged.
    # A row whose identity spans the whole batch leaves an2 = +inf: the hinge is
    # then 0 and prec counts it as correct, matching the reference behavior.
    dist_ap = jnp.sqrt(jnp.maximum(ap2, 1e-12))
    dist_an = jnp.sqrt(jnp.maximum(an2, 1e-12))
    loss = jnp.mean(jnp.maximum(dist_ap - dist_an + jnp.float32(margin), 0.0))
    prec = jnp.mean((dist_an > dist_ap).astype(jnp.float32))
    return loss, prec


def _reference(inputs, targets, margin=0.0):
    # Pure-JAX reference mirroring the PyTorch forward.
    x = inputs.astype(jnp.float32)
    sq = jnp.sum(x * x, axis=1, keepdims=True)
    gram = jnp.dot(x, x.T, precision=lax.Precision.HIGHEST)
    dist = jnp.sqrt(jnp.maximum(sq + sq.T - 2.0 * gram, 1e-12))
    mask = targets[:, None] == targets[None, :]
    dist_ap = jnp.max(jnp.where(mask, dist, -jnp.inf), axis=1)
    dist_an = jnp.min(jnp.where(mask, jnp.inf, dist), axis=1)
    loss = jnp.mean(jnp.maximum(dist_ap - dist_an + margin, 0.0))
    prec = jnp.mean((dist_an > dist_ap).astype(jnp.float32))
    return loss, prec


if __name__ == "__main__":
    key = jax.random.PRNGKey(0)
    # Deliberately non-tile-aligned batch to exercise the +inf / sentinel-label
    # padding path and a 2x2 grid (2 parallel row blocks, 2 accumulated col blocks).
    n, d, num_ids = 300, 64, 30
    inputs = jax.random.normal(key, (n, d), dtype=jnp.float32)
    targets = jnp.arange(n, dtype=jnp.int32) % num_ids   # 10 samples per identity

    loss, prec = triplet_loss(inputs, targets, margin=0.3)
    loss = jax.block_until_ready(loss)
    prec = jax.block_until_ready(prec)

    ref_loss, ref_prec = _reference(inputs, targets, margin=0.3)
    assert jnp.allclose(loss, ref_loss, atol=1e-3, rtol=1e-3), (loss, ref_loss)
    assert jnp.allclose(prec, ref_prec, atol=1e-2), (prec, ref_prec)

    print("KERNEL_OK")
</pallas_src>

<mosaic_0001>
module attributes {stable_mosaic.version = 11 : i64} {
  func.func @_triplet_tile_kernel(%arg0: i32, %arg1: i32, %arg2: memref<256x64xf32, #tpu.memory_space<vmem>>, %arg3: memref<256x64xf32, #tpu.memory_space<vmem>>, %arg4: memref<256x1xf32, #tpu.memory_space<vmem>>, %arg5: memref<1x256xf32, #tpu.memory_space<vmem>>, %arg6: memref<256x1xi32, #tpu.memory_space<vmem>>, %arg7: memref<1x256xi32, #tpu.memory_space<vmem>>, %arg8: memref<256x1xf32, #tpu.memory_space<vmem>>, %arg9: memref<256x1xf32, #tpu.memory_space<vmem>>) attributes {dimension_semantics = [#tpu.dimension_semantics<parallel>, #tpu.dimension_semantics<arbitrary>], iteration_bounds = array<i64: 2, 2>, scalar_prefetch = 0 : i64, scratch_operands = 0 : i64, tpu.core_type = #tpu.core_type<tc>, window_params = [{transform_indices = @transform_0, window_bounds = array<i64: 256, 64>}, {transform_indices = @transform_1, window_bounds = array<i64: 256, 64>}, {transform_indices = @transform_2, window_bounds = array<i64: 256, 1>}, {transform_indices = @transform_3, window_bounds = array<i64: 1, 256>}, {transform_indices = @transform_4, window_bounds = array<i64: 256, 1>}, {transform_indices = @transform_5, window_bounds = array<i64: 1, 256>}, {transform_indices = @transform_6, window_bounds = array<i64: 256, 1>}, {transform_indices = @transform_7, window_bounds = array<i64: 256, 1>}]} {
    %c0_i32 = arith.constant 0 : i32
    %0 = arith.cmpi eq, %arg1, %c0_i32 : i32
    %1 = arith.extui %0 : i1 to i32
    %c0_i32_0 = arith.constant 0 : i32
    %2 = arith.cmpi ne, %1, %c0_i32_0 : i32
    scf.if %2 {
      %cst_25 = arith.constant 0xFF800000 : f32
      %33 = vector.broadcast %cst_25 : f32 to vector<256x1xf32>
      %c0_26 = arith.constant 0 : index
      %c0_27 = arith.constant 0 : index
      %34 = vector.load %arg8[%c0_26, %c0_27] : memref<256x1xf32, #tpu.memory_space<vmem>>, vector<256x1xf32>
      tpu.vector_store %arg8[%c0_26, %c0_27], %33 {strides = array<i32>} : memref<256x1xf32, #tpu.memory_space<vmem>>, vector<256x1xf32>,
      %cst_28 = arith.constant 0x7F800000 : f32
      %35 = vector.broadcast %cst_28 : f32 to vector<256x1xf32>
      %c0_29 = arith.constant 0 : index
      %c0_30 = arith.constant 0 : index
      %36 = vector.load %arg9[%c0_29, %c0_30] : memref<256x1xf32, #tpu.memory_space<vmem>>, vector<256x1xf32>
      tpu.vector_store %arg9[%c0_29, %c0_30], %35 {strides = array<i32>} : memref<256x1xf32, #tpu.memory_space<vmem>>, vector<256x1xf32>,
    } else {
    }
    %c0 = arith.constant 0 : index
    %c0_1 = arith.constant 0 : index
    %3 = vector.load %arg2[%c0, %c0_1] : memref<256x64xf32, #tpu.memory_space<vmem>>, vector<256x64xf32>
    %c0_2 = arith.constant 0 : index
    %c0_3 = arith.constant 0 : index
    %4 = vector.load %arg3[%c0_2, %c0_3] : memref<256x64xf32, #tpu.memory_space<vmem>>, vector<256x64xf32>
    %cst = arith.constant dense<0.000000e+00> : vector<256x256xf32>
    %5 = tpu.matmul %3, %4, %cst {dimension_numbers = #tpu.dot_dimension_numbers<[1], [1], [0], [0], [0, 0, 1, 0], [], []>} : vector<256x64xf32>, vector<256x64xf32>, vector<256x256xf32> -> vector<256x256xf32>
    %c0_4 = arith.constant 0 : index
    %c0_5 = arith.constant 0 : index
    %6 = vector.load %arg4[%c0_4, %c0_5] : memref<256x1xf32, #tpu.memory_space<vmem>>, vector<256x1xf32>
    %c0_6 = arith.constant 0 : index
    %c0_7 = arith.constant 0 : index
    %7 = vector.load %arg5[%c0_6, %c0_7] : memref<1x256xf32, #tpu.memory_space<vmem>>, vector<1x256xf32>
    %8 = vector.broadcast %6 : vector<256x1xf32> to vector<256x256xf32>
    %9 = vector.broadcast %7 : vector<1x256xf32> to vector<256x256xf32>
    %10 = arith.addf %8, %9 : vector<256x256xf32>
    %cst_8 = arith.constant 2.000000e+00 : f32
    %11 = vector.broadcast %cst_8 : f32 to vector<256x256xf32>
    %12 = arith.mulf %11, %5 : vector<256x256xf32>
    %13 = arith.subf %10, %12 : vector<256x256xf32>
    %c0_9 = arith.constant 0 : index
    %c0_10 = arith.constant 0 : index
    %14 = vector.load %arg6[%c0_9, %c0_10] : memref<256x1xi32, #tpu.memory_space<vmem>>, vector<256x1xi32>
    %c0_11 = arith.constant 0 : index
    %c0_12 = arith.constant 0 : index
    %15 = vector.load %arg7[%c0_11, %c0_12] : memref<1x256xi32, #tpu.memory_space<vmem>>, vector<1x256xi32>
    %16 = vector.broadcast %14 : vector<256x1xi32> to vector<256x256xi32>
    %17 = vector.broadcast %15 : vector<1x256xi32> to vector<256x256xi32>
    %18 = arith.cmpi eq, %16, %17 : vector<256x256xi32>
    %cst_13 = arith.constant 0xFF800000 : f32
    %19 = vector.broadcast %cst_13 : f32 to vector<256x256xf32>
    %20 = arith.select %18, %13, %19 : vector<256x256xi1>, vector<256x256xf32>
    %cst_14 = arith.constant dense<0xFF800000> : vector<256xf32>
    %21 = vector.multi_reduction <maximumf>, %20, %cst_14 [1] : vector<256x256xf32> to vector<256xf32>
    %22 = vector.shape_cast %21 : vector<256xf32> to vector<256x1xf32>
    %cst_15 = arith.constant 0x7F800000 : f32
    %23 = vector.broadcast %cst_15 : f32 to vector<256x256xf32>
    %24 = arith.select %18, %23, %13 : vector<256x256xi1>, vector<256x256xf32>
    %cst_16 = arith.constant dense<0x7F800000> : vector<256xf32>
    %25 = vector.multi_reduction <minimumf>, %24, %cst_16 [1] : vector<256x256xf32> to vector<256xf32>
    %26 = vector.shape_cast %25 : vector<256xf32> to vector<256x1xf32>
    %c0_17 = arith.constant 0 : index
    %c0_18 = arith.constant 0 : index
    %27 = vector.load %arg8[%c0_17, %c0_18] : memref<256x1xf32, #tpu.memory_space<vmem>>, vector<256x1xf32>
    %28 = arith.maximumf %27, %22 : vector<256x1xf32>
    %c0_19 = arith.constant 0 : index
    %c0_20 = arith.constant 0 : index
    %29 = vector.load %arg8[%c0_19, %c0_20] : memref<256x1xf32, #tpu.memory_space<vmem>>, vector<256x1xf32>
    tpu.vector_store %arg8[%c0_19, %c0_20], %28 {strides = array<i32>} : memref<256x1xf32, #tpu.memory_space<vmem>>, vector<256x1xf32>,
    %c0_21 = arith.constant 0 : index
    %c0_22 = arith.constant 0 : index
    %30 = vector.load %arg9[%c0_21, %c0_22] : memref<256x1xf32, #tpu.memory_space<vmem>>, vector<256x1xf32>
    %31 = arith.minimumf %30, %26 : vector<256x1xf32>
    %c0_23 = arith.constant 0 : index
    %c0_24 = arith.constant 0 : index
    %32 = vector.load %arg9[%c0_23, %c0_24] : memref<256x1xf32, #tpu.memory_space<vmem>>, vector<256x1xf32>
    tpu.vector_store %arg9[%c0_23, %c0_24], %31 {strides = array<i32>} : memref<256x1xf32, #tpu.memory_space<vmem>>, vector<256x1xf32>,
    return
  }
  func.func @transform_0(%arg0: i32, %arg1: i32) -> (i32, i32) {
    %c0_i32 = arith.constant 0 : i32
    %c0_i32_0 = arith.constant 0 : i32
    return %arg0, %c0_i32 : i32, i32
  }
  func.func @transform_1(%arg0: i32, %arg1: i32) -> (i32, i32) {
    %c0_i32 = arith.constant 0 : i32
    %c0_i32_0 = arith.constant 0 : i32
    return %arg1, %c0_i32 : i32, i32
  }
  func.func @transform_2(%arg0: i32, %arg1: i32) -> (i32, i32) {
    %c0_i32 = arith.constant 0 : i32
    %c0_i32_0 = arith.constant 0 : i32
    return %arg0, %c0_i32 : i32, i32
  }
  func.func @transform_3(%arg0: i32, %arg1: i32) -> (i32, i32) {
    %c0_i32 = arith.constant 0 : i32
    %c0_i32_0 = arith.constant 0 : i32
    return %c0_i32, %arg1 : i32, i32
  }
  func.func @transform_4(%arg0: i32, %arg1: i32) -> (i32, i32) {
    %c0_i32 = arith.constant 0 : i32
    %c0_i32_0 = arith.constant 0 : i32
    return %arg0, %c0_i32 : i32, i32
  }
  func.func @transform_5(%arg0: i32, %arg1: i32) -> (i32, i32) {
    %c0_i32 = arith.constant 0 : i32
    %c0_i32_0 = arith.constant 0 : i32
    return %c0_i32, %arg1 : i32, i32
  }
  func.func @transform_6(%arg0: i32, %arg1: i32) -> (i32, i32) {
    %c0_i32 = arith.constant 0 : i32
    %c0_i32_0 = arith.constant 0 : i32
    return %arg0, %c0_i32 : i32, i32
  }
  func.func @transform_7(%arg0: i32, %arg1: i32) -> (i32, i32) {
    %c0_i32 = arith.constant 0 : i32
    %c0_i32_0 = arith.constant 0 : i32
    return %arg0, %c0_i32 : i32, i32
  }
}

</mosaic_0001>

<llo_original>
// kernel: tpu_custom_call.1
$region0: #{tpu_custom_call.1}
  #allocation0 [shape = 'u32[]', space=smem, size = 0x4, offset = 0x4, fixed_abs, tag = 'smem constant byte address 0x4 - core index']
  #allocation1 [shape = 'u32[144,128]{1,0:T(1,128)}', space=vmem, size = 0x12000, scoped, tag = 'internal scratch']
  %s0 = inlined_call_operand.vmem [shape: f32[512,64], index: 0, kind: input, shape index: {}]
  %s1 = inlined_call_operand.vmem [shape: f32[512,64], index: 1, kind: input, shape index: {}]
  %s2 = inlined_call_operand.vmem [shape: f32[512,1], index: 2, kind: input, shape index: {}]
  %s3 = inlined_call_operand.vmem [shape: f32[1,512], index: 3, kind: input, shape index: {}]
  %s4 = inlined_call_operand.vmem [shape: s32[512,1], index: 4, kind: input, shape index: {}]
  %s5 = inlined_call_operand.vmem [shape: s32[1,512], index: 5, kind: input, shape index: {}]
  %s6 = inlined_call_operand.vmem [shape: f32[512,1], index: 6, kind: output, shape index: {0}]
  %s7 = inlined_call_operand.vmem [shape: f32[512,1], index: 7, kind: output, shape index: {1}]
  %8 = xla_tuple %s6, %s7
  %s9 = sld [smem:[#allocation0]]
  $region69: #{tpu_custom_call.1} parent=0
    _
  %s11 = ssub.s32 1, %s9
  %s12 = scalar_select 0, %s11, %s9
  loop: start=0, step=1, limit=6
  $region2: #{tpu_custom_call.1} parent=0 // loop_pre_header
    _
  $region3: #{tpu_custom_call.1} parent=0 // loop_header
    %s14 = sphi 0, %s18
    %p15 = scmp.ge.s32.totalorder %s14, 6
    %s21 = sphi 0, %s33
    %s22 = sphi 0, %s29
    %s23 = sphi 0, %s21
    %s24 = sphi 0, %s22
    %s25 = sphi 0, %s23
    %s26 = sphi 0, %s24
    %s36 = sphi 0, %s38
    %s39 = sphi 0, %s36
    %s40 = sphi 0, %s39
    %s56 = sphi 0, %s40
    %s62 = sphi 0, %s64
    %s65 = sphi 0, %s62
    %s66 = sphi 0, %s65
    %s82 = sphi 0, %s66
    %s88 = sphi 0, %s90
    %s91 = sphi 0, %s88
    %s92 = sphi 0, %s91
    %s108 = sphi 0, %s92
    %s114 = sphi 0, %s116
    %s117 = sphi 0, %s114
    %s118 = sphi 0, %s117
    %s134 = sphi 0, %s118
    %s140 = sphi 0, %s142
    %s143 = sphi 0, %s140
    %s144 = sphi 0, %s143
    %s160 = sphi 0, %s144
    %s166 = sphi 0, %s168
    %s169 = sphi 0, %s166
    %s170 = sphi 0, %s169
    %s186 = sphi 0, %s170
    %s192 = sphi 0, %s194
    %s195 = sphi 0, %s192
    %s196 = sphi 0, %s195
    %s212 = sphi 0, %s196
    %s218 = sphi 0, %s220
    %s221 = sphi 0, %s218
    %s222 = sphi 0, %s221
    %s238 = sphi 0, %s222
  $region4: #{tpu_custom_call.1} parent=0 // loop_header_branch
    %17 = sbr.rel (%p15) target = $region8
  $region5: #{tpu_custom_call.1} parent=0 // loop_body
    %s19 = ssub.s32 %s14, 1
    %s20 = ssub.s32 %s14, 2
    %s27 = sadd.s32 1, %s22
    %p28 = scmp.ge.s32.totalorder %s27, 2
    %s29 = scalar_select %p28, 0, %s27
    %s30 = sadd.s32 1, %s21
    %s31 = scalar_select %p28, %s30, %s21
    %p32 = scmp.ge.s32.totalorder %s31, 2
    %s33 = scalar_select %p32, 0, %s31
    %s34 = ssub.s32 %s21, %s33
    %p35 = scmp.eq.s32.totalorder %s34, 0
    %s37 = sadd.s32 %s36, 1
    %s38 = scalar_select %p35, %s36, %s37
    %p41 = pneg %p35
    %p42 = scmp.eq.s32.totalorder %s14, 3
    %p43 = por %p41, %p42
    %p44 = scmp.ne.s32.totalorder %s36, %s39
    %p45 = scmp.eq.s32.totalorder %s14, 0
    %p46 = por %p44, %p45
    %p47 = scmp.ne.s32.totalorder %s36, %s39
    %p48 = scmp.eq.s32.totalorder %s19, 3
    %p49 = por %p47, %p48
    %p50 = scmp.ne.s32.totalorder %s39, %s40
    %p51 = scmp.eq.s32.totalorder %s19, 0
    %p52 = por %p50, %p51
    %p53 = scmp.ne.s32.totalorder %s39, %s40
    %p54 = scmp.eq.s32.totalorder %s20, 3
    %p55 = por %p53, %p54
    %p57 = scmp.ne.s32.totalorder %s40, %s56
    %p58 = scmp.eq.s32.totalorder %s20, 0
    %p59 = por %p57, %p58
    %s60 = ssub.s32 %s22, %s29
    %p61 = scmp.eq.s32.totalorder %s60, 0
    %s63 = sadd.s32 %s62, 1
    %s64 = scalar_select %p61, %s62, %s63
    %p67 = pneg %p61
    %p68 = scmp.eq.s32.totalorder %s14, 3
    %p69 = por %p67, %p68
    %p70 = scmp.ne.s32.totalorder %s62, %s65
    %p71 = scmp.eq.s32.totalorder %s14, 0
    %p72 = por %p70, %p71
    %p73 = scmp.ne.s32.totalorder %s62, %s65
    %p74 = scmp.eq.s32.totalorder %s19, 3
    %p75 = por %p73, %p74
    %p76 = scmp.ne.s32.totalorder %s65, %s66
    %p77 = scmp.eq.s32.totalorder %s19, 0
    %p78 = por %p76, %p77
    %p79 = scmp.ne.s32.totalorder %s65, %s66
    %p80 = scmp.eq.s32.totalorder %s20, 3
    %p81 = por %p79, %p80
    %p83 = scmp.ne.s32.totalorder %s66, %s82
    %p84 = scmp.eq.s32.totalorder %s20, 0
    %p85 = por %p83, %p84
    %s86 = ssub.s32 %s21, %s33
    %p87 = scmp.eq.s32.totalorder %s86, 0
    %s89 = sadd.s32 %s88, 1
    %s90 = scalar_select %p87, %s88, %s89
    %p93 = pneg %p87
    %p94 = scmp.eq.s32.totalorder %s14, 3
    %p95 = por %p93, %p94
    %p96 = scmp.ne.s32.totalorder %s88, %s91
    %p97 = scmp.eq.s32.totalorder %s14, 0
    %p98 = por %p96, %p97
    %p99 = scmp.ne.s32.totalorder %s88, %s91
    %p100 = scmp.eq.s32.totalorder %s19, 3
    %p101 = por %p99, %p100
    %p102 = scmp.ne.s32.totalorder %s91, %s92
    %p103 = scmp.eq.s32.totalorder %s19, 0
    %p104 = por %p102, %p103
    %p105 = scmp.ne.s32.totalorder %s91, %s92
    %p106 = scmp.eq.s32.totalorder %s20, 3
    %p107 = por %p105, %p106
    %p109 = scmp.ne.s32.totalorder %s92, %s108
    %p110 = scmp.eq.s32.totalorder %s20, 0
    %p111 = por %p109, %p110
    %s112 = ssub.s32 %s22, %s29
    %p113 = scmp.eq.s32.totalorder %s112, 0
    %s115 = sadd.s32 %s114, 1
    %s116 = scalar_select %p113, %s114, %s115
    %p119 = pneg %p113
    %p120 = scmp.eq.s32.totalorder %s14, 3
    %p121 = por %p119, %p120
    %p122 = scmp.ne.s32.totalorder %s114, %s117
    %p123 = scmp.eq.s32.totalorder %s14, 0
    %p124 = por %p122, %p123
    %p125 = scmp.ne.s32.totalorder %s114, %s117
    %p126 = scmp.eq.s32.totalorder %s19, 3
    %p127 = por %p125, %p126
    %p128 = scmp.ne.s32.totalorder %s117, %s118
    %p129 = scmp.eq.s32.totalorder %s19, 0
    %p130 = por %p128, %p129
    %p131 = scmp.ne.s32.totalorder %s117, %s118
    %p132 = scmp.eq.s32.totalorder %s20, 3
    %p133 = por %p131, %p132
    %p135 = scmp.ne.s32.totalorder %s118, %s134
    %p136 = scmp.eq.s32.totalorder %s20, 0
    %p137 = por %p135, %p136
    %s138 = ssub.s32 %s21, %s33
    %p139 = scmp.eq.s32.totalorder %s138, 0
    %s141 = sadd.s32 %s140, 1
    %s142 = scalar_select %p139, %s140, %s141
    %p145 = pneg %p139
    %p146 = scmp.eq.s32.totalorder %s14, 3
    %p147 = por %p145, %p146
    %p148 = scmp.ne.s32.totalorder %s140, %s143
    %p149 = scmp.eq.s32.totalorder %s14, 0
    %p150 = por %p148, %p149
    %p151 = scmp.ne.s32.totalorder %s140, %s143
    %p152 = scmp.eq.s32.totalorder %s19, 3
    %p153 = por %p151, %p152
    %p154 = scmp.ne.s32.totalorder %s143, %s144
    %p155 = scmp.eq.s32.totalorder %s19, 0
    %p156 = por %p154, %p155
    %p157 = scmp.ne.s32.totalorder %s143, %s144
    %p158 = scmp.eq.s32.totalorder %s20, 3
    %p159 = por %p157, %p158
    %p161 = scmp.ne.s32.totalorder %s144, %s160
    %p162 = scmp.eq.s32.totalorder %s20, 0
    %p163 = por %p161, %p162
    %s164 = ssub.s32 %s22, %s29
    %p165 = scmp.eq.s32.totalorder %s164, 0
    %s167 = sadd.s32 %s166, 1
    %s168 = scalar_select %p165, %s166, %s167
    %p171 = pneg %p165
    %p172 = scmp.eq.s32.totalorder %s14, 3
    %p173 = por %p171, %p172
    %p174 = scmp.ne.s32.totalorder %s166, %s169
    %p175 = scmp.eq.s32.totalorder %s14, 0
    %p176 = por %p174, %p175
    %p177 = scmp.ne.s32.totalorder %s166, %s169
    %p178 = scmp.eq.s32.totalorder %s19, 3
    %p179 = por %p177, %p178
    %p180 = scmp.ne.s32.totalorder %s169, %s170
    %p181 = scmp.eq.s32.totalorder %s19, 0
    %p182 = por %p180, %p181
    %p183 = scmp.ne.s32.totalorder %s169, %s170
    %p184 = scmp.eq.s32.totalorder %s20, 3
    %p185 = por %p183, %p184
    %p187 = scmp.ne.s32.totalorder %s170, %s186
    %p188 = scmp.eq.s32.totalorder %s20, 0
    %p189 = por %p187, %p188
    %s190 = ssub.s32 %s21, %s33
    %p191 = scmp.eq.s32.totalorder %s190, 0
    %s193 = sadd.s32 %s192, 1
    %s194 = scalar_select %p191, %s192, %s193
    %p197 = pneg %p191
    %p198 = scmp.eq.s32.totalorder %s14, 3
    %p199 = por %p197, %p198
    %p200 = scmp.ne.s32.totalorder %s192, %s195
    %p201 = scmp.eq.s32.totalorder %s14, 0
    %p202 = por %p200, %p201
    %p203 = scmp.ne.s32.totalorder %s192, %s195
    %p204 = scmp.eq.s32.totalorder %s19, 3
    %p205 = por %p203, %p204
    %p206 = scmp.ne.s32.totalorder %s195, %s196
    %p207 = scmp.eq.s32.totalorder %s19, 0
    %p208 = por %p206, %p207
    %p209 = scmp.ne.s32.totalorder %s195, %s196
    %p210 = scmp.eq.s32.totalorder %s20, 3
    %p211 = por %p209, %p210
    %p213 = scmp.ne.s32.totalorder %s196, %s212
    %p214 = scmp.eq.s32.totalorder %s20, 0
    %p215 = por %p213, %p214
    %s216 = ssub.s32 %s21, %s33
    %p217 = scmp.eq.s32.totalorder %s216, 0
    %s219 = sadd.s32 %s218, 1
    %s220 = scalar_select %p217, %s218, %s219
    %p223 = pneg %p217
    %p224 = scmp.eq.s32.totalorder %s14, 3
    %p225 = por %p223, %p224
    %p226 = scmp.ne.s32.totalorder %s218, %s221
    %p227 = scmp.eq.s32.totalorder %s14, 0
    %p228 = por %p226, %p227
    %p229 = scmp.ne.s32.totalorder %s218, %s221
    %p230 = scmp.eq.s32.totalorder %s19, 3
    %p231 = por %p229, %p230
    %p232 = scmp.ne.s32.totalorder %s221, %s222
    %p233 = scmp.eq.s32.totalorder %s19, 0
    %p234 = por %p232, %p233
    %p235 = scmp.ne.s32.totalorder %s221, %s222
    %p236 = scmp.eq.s32.totalorder %s20, 3
    %p237 = por %p235, %p236
    %p239 = scmp.ne.s32.totalorder %s222, %s238
    %p240 = scmp.eq.s32.totalorder %s20, 0
    %p241 = por %p239, %p240
    %p242 = scmp.le.s32.totalorder 1, %s14
    %p243 = scmp.lt.s32.totalorder %s14, 5
    %p244 = pnand %p242, %p243
    %p245 = pneg %p244
    // Predicated region
    $region9: #{tpu_custom_call.1} parent=5 // pred_check
      _
    $region10: #{tpu_custom_call.1} parent=5 // pred_check_branch
      %247 = sbr.rel (%p244) target = $region12
    $region11: #{tpu_custom_call.1} parent=5 // pred_region
      %s248 = ssub.s32 %s14, 1
    $region12: #{tpu_custom_call.1} parent=5 // pred_fallthru
      _
    %p249 = scmp.lt.s32.totalorder %s14, 4
    // Predicated region
    $region13: #{tpu_custom_call.1} parent=5 // pred_check
      %p250 = pneg %p249
    $region14: #{tpu_custom_call.1} parent=5 // pred_check_branch
      %252 = sbr.rel (%p250) target = $region16
    $region15: #{tpu_custom_call.1} parent=5 // pred_region
      // Predicated region
      $region17: #{tpu_custom_call.1} parent=15 // pred_check
        %p253 = pneg %p46
      $region18: #{tpu_custom_call.1} parent=15 // pred_check_branch
        %255 = sbr.rel (%p253) target = $region20
      $region19: #{tpu_custom_call.1} parent=15 // pred_region
        %s256 = smul.u32 32, %s21
        %p257 = scmp.lt.s32.totalorder %s256, 63
        %s258 = scalar_select %p257, %s256, 63
        %s259 = smul.addr %s258, 8
        %s260 = scalar_lea.vmem %s0, %s259
        %s261 = smul.u32 32, %s21
      $region20: #{tpu_custom_call.1} parent=15 // pred_fallthru
        _
      // Predicated region
      $region21: #{tpu_custom_call.1} parent=15 // pred_check
        %p262 = pneg %p72
      $region22: #{tpu_custom_call.1} parent=15 // pred_check_branch
        %264 = sbr.rel (%p262) target = $region24
      $region23: #{tpu_custom_call.1} parent=15 // pred_region
        %s265 = smul.u32 32, %s22
        %p266 = scmp.lt.s32.totalorder %s265, 63
        %s267 = scalar_select %p266, %s265, 63
        %s268 = smul.addr %s267, 8
        %s269 = scalar_lea.vmem %s1, %s268
        %s270 = smul.u32 32, %s22
      $region24: #{tpu_custom_call.1} parent=15 // pred_fallthru
        _
      // Predicated region
      $region25: #{tpu_custom_call.1} parent=15 // pred_check
        %p271 = pneg %p98
      $region26: #{tpu_custom_call.1} parent=15 // pred_check_branch
        %273 = sbr.rel (%p271) target = $region28
      $region27: #{tpu_custom_call.1} parent=15 // pred_region
        %s274 = smul.u32 32, %s21
        %p275 = scmp.lt.s32.totalorder %s274, 63
        %s276 = scalar_select %p275, %s274, 63
        %s277 = smul.addr %s276, 8
        %s278 = scalar_lea.vmem %s2, %s277
        %s279 = smul.u32 32, %s21
      $region28: #{tpu_custom_call.1} parent=15 // pred_fallthru
        _
      // Predicated region
      $region29: #{tpu_custom_call.1} parent=15 // pred_check
        %p280 = pneg %p124
      $region30: #{tpu_custom_call.1} parent=15 // pred_check_branch
        %282 = sbr.rel (%p280) target = $region32
      $region31: #{tpu_custom_call.1} parent=15 // pred_region
        %s283 = smul.u32 2, %s22
        %p284 = scmp.lt.s32.totalorder %s283, 3
        %s285 = scalar_select %p284, %s283, 3
        %s286 = scalar_lea.vmem %s3, %s285
        %s287 = smul.u32 2, %s22
      $region32: #{tpu_custom_call.1} parent=15 // pred_fallthru
        _
      // Predicated region
      $region33: #{tpu_custom_call.1} parent=15 // pred_check
        %p288 = pneg %p150
      $region34: #{tpu_custom_call.1} parent=15 // pred_check_branch
        %290 = sbr.rel (%p288) target = $region36
      $region35: #{tpu_custom_call.1} parent=15 // pred_region
        %s291 = smul.u32 32, %s21
        %p292 = scmp.lt.s32.totalorder %s291, 63
        %s293 = scalar_select %p292, %s291, 63
        %s294 = smul.addr %s293, 8
        %s295 = scalar_lea.vmem %s4, %s294
        %s296 = smul.u32 32, %s21
      $region36: #{tpu_custom_call.1} parent=15 // pred_fallthru
        _
      // Predicated region
      $region37: #{tpu_custom_call.1} parent=15 // pred_check
        %p297 = pneg %p176
      $region38: #{tpu_custom_call.1} parent=15 // pred_check_branch
        %299 = sbr.rel (%p297) target = $region40
      $region39: #{tpu_custom_call.1} parent=15 // pred_region
        %s300 = smul.u32 2, %s22
        %p301 = scmp.lt.s32.totalorder %s300, 3
        %s302 = scalar_select %p301, %s300, 3
        %s303 = scalar_lea.vmem %s5, %s302
        %s304 = smul.u32 2, %s22
      $region40: #{tpu_custom_call.1} parent=15 // pred_fallthru
        _
    $region16: #{tpu_custom_call.1} parent=5 // pred_fallthru
      _
    %p305 = scmp.le.s32.totalorder 1, %s14
    %p306 = scmp.lt.s32.totalorder %s14, 5
    %p307 = pnand %p305, %p306
    %p308 = pneg %p307
    // Predicated region
    $region41: #{tpu_custom_call.1} parent=5 // pred_check
      _
    $region42: #{tpu_custom_call.1} parent=5 // pred_check_branch
      %310 = sbr.rel (%p307) target = $region44
    $region43: #{tpu_custom_call.1} parent=5 // pred_region
      %s311 = ssub.s32 %s14, 1
      %s312 = smul.u32 32, %s23
      %p313 = scmp.lt.s32.totalorder %s312, 63
      %s314 = scalar_select %p313, %s312, 63
      %s315 = smul.addr %s314, 8
      %s316 = scalar_lea.vmem %s0, %s315
      %p317 = pneg %p52
      %p318 = pneg %p49
      %s319 = smul.u32 32, %s24
      %p320 = scmp.lt.s32.totalorder %s319, 63
      %s321 = scalar_select %p320, %s319, 63
      %s322 = smul.addr %s321, 8
      %s323 = scalar_lea.vmem %s1, %s322
      %p324 = pneg %p78
      %p325 = pneg %p75
      %s326 = smul.u32 32, %s23
      %p327 = scmp.lt.s32.totalorder %s326, 63
      %s328 = scalar_select %p327, %s326, 63
      %s329 = smul.addr %s328, 8
      %s330 = scalar_lea.vmem %s2, %s329
      %p331 = pneg %p104
      %p332 = pneg %p101
      %s333 = smul.u32 2, %s24
      %p334 = scmp.lt.s32.totalorder %s333, 3
      %s335 = scalar_select %p334, %s333, 3
      %s336 = scalar_lea.vmem %s3, %s335
      %p337 = pneg %p130
      %p338 = pneg %p127
      %s339 = smul.u32 32, %s23
      %p340 = scmp.lt.s32.totalorder %s339, 63
      %s341 = scalar_select %p340, %s339, 63
      %s342 = smul.addr %s341, 8
      %s343 = scalar_lea.vmem %s4, %s342
      %p344 = pneg %p156
      %p345 = pneg %p153
      %s346 = smul.u32 2, %s24
      %p347 = scmp.lt.s32.totalorder %s346, 3
      %s348 = scalar_select %p347, %s346, 3
      %s349 = scalar_lea.vmem %s5, %s348
      %p350 = pneg %p182
      %p351 = pneg %p179
      %p352 = pneg %p208
      %p353 = pneg %p205
      %s354 = smul.u32 32, %s23
      %p355 = scmp.lt.s32.totalorder %s354, 63
      %s356 = scalar_select %p355, %s354, 63
      %s357 = smul.addr %s356, 8
      %s358 = scalar_lea.vmem %s6, %s357
      %p359 = pneg %p234
      %p360 = pneg %p231
      %s361 = smul.u32 32, %s23
      %p362 = scmp.lt.s32.totalorder %s361, 63
      %s363 = scalar_select %p362, %s361, 63
      %s364 = smul.addr %s363, 8
      %s365 = scalar_lea.vmem %s7, %s364
      %s366 = smul.u32 32, %s23
      %p367 = scmp.lt.s32.totalorder %s366, 63
      %s368 = scalar_select %p367, %s366, 63
      %s369 = smul.addr %s368, 8
      %s370 = scalar_lea.vmem %s0, %s369
      %s371 = smul.u32 32, %s23
      %s372 = smul.u32 32, %s24
      %p373 = scmp.lt.s32.totalorder %s372, 63
      %s374 = scalar_select %p373, %s372, 63
      %s375 = smul.addr %s374, 8
      %s376 = scalar_lea.vmem %s1, %s375
      %s377 = smul.u32 32, %s24
      %s378 = smul.u32 32, %s23
      %p379 = scmp.lt.s32.totalorder %s378, 63
      %s380 = scalar_select %p379, %s378, 63
      %s381 = smul.addr %s380, 8
      %s382 = scalar_lea.vmem %s2, %s381
      %s383 = smul.u32 32, %s23
      %s384 = smul.u32 2, %s24
      %p385 = scmp.lt.s32.totalorder %s384, 3
      %s386 = scalar_select %p385, %s384, 3
      %s387 = scalar_lea.vmem %s3, %s386
      %s388 = smul.u32 2, %s24
      %s389 = smul.u32 32, %s23
      %p390 = scmp.lt.s32.totalorder %s389, 63
      %s391 = scalar_select %p390, %s389, 63
      %s392 = smul.addr %s391, 8
      %s393 = scalar_lea.vmem %s4, %s392
      %s394 = smul.u32 32, %s23
      %s395 = smul.u32 2, %s24
      %p396 = scmp.lt.s32.totalorder %s395, 3
      %s397 = scalar_select %p396, %s395, 3
      %s398 = scalar_lea.vmem %s5, %s397
      %s399 = smul.u32 2, %s24
      %s400 = smul.u32 32, %s23
      %p401 = scmp.lt.s32.totalorder %s400, 63
      %s402 = scalar_select %p401, %s400, 63
      %s403 = smul.addr %s402, 8
      %s404 = scalar_lea.vmem %s6, %s403
      %s405 = smul.u32 32, %s23
      %s406 = smul.u32 32, %s23
      %p407 = scmp.lt.s32.totalorder %s406, 63
      %s408 = scalar_select %p407, %s406, 63
      %s409 = smul.addr %s408, 8
      %s410 = scalar_lea.vmem %s7, %s409
      %s411 = smul.u32 32, %s23
      %p412 = scmp.eq.s32.totalorder %s24, 0
      // Predicated region
      $region45: #{tpu_custom_call.1} parent=43 // pred_check
        %p413 = pneg %p412
      $region46: #{tpu_custom_call.1} parent=43 // pred_check_branch
        %415 = sbr.rel (%p413) target = $region48
      $region47: #{tpu_custom_call.1} parent=43 // pred_region
        %vm416 = vcmask 7168
        %417 = vst.msk [vmem:[%s404] sm:$0xff] %vm416, -inf
        %418 = vst.msk [vmem:[%s404 + $0x8] sm:$0xff] %vm416, -inf
        %419 = vst.msk [vmem:[%s404 + $0x10] sm:$0xff] %vm416, -inf
        %420 = vst.msk [vmem:[%s404 + $0x18] sm:$0xff] %vm416, -inf
        %421 = vst.msk [vmem:[%s404 + $0x20] sm:$0xff] %vm416, -inf
        %422 = vst.msk [vmem:[%s404 + $0x28] sm:$0xff] %vm416, -inf
        %423 = vst.msk [vmem:[%s404 + $0x30] sm:$0xff] %vm416, -inf
        %424 = vst.msk [vmem:[%s404 + $0x38] sm:$0xff] %vm416, -inf
        %425 = vst.msk [vmem:[%s404 + $0x40] sm:$0xff] %vm416, -inf
        %426 = vst.msk [vmem:[%s404 + $0x48] sm:$0xff] %vm416, -inf
        %427 = vst.msk [vmem:[%s404 + $0x50] sm:$0xff] %vm416, -inf
        %428 = vst.msk [vmem:[%s404 + $0x58] sm:$0xff] %vm416, -inf
        %429 = vst.msk [vmem:[%s404 + $0x60] sm:$0xff] %vm416, -inf
        %430 = vst.msk [vmem:[%s404 + $0x68] sm:$0xff] %vm416, -inf
        %431 = vst.msk [vmem:[%s404 + $0x70] sm:$0xff] %vm416, -inf
        %432 = vst.msk [vmem:[%s404 + $0x78] sm:$0xff] %vm416, -inf
        %433 = vst.msk [vmem:[%s404 + $0x80] sm:$0xff] %vm416, -inf
        %434 = vst.msk [vmem:[%s404 + $0x88] sm:$0xff] %vm416, -inf
        %435 = vst.msk [vmem:[%s404 + $0x90] sm:$0xff] %vm416, -inf
        %436 = vst.msk [vmem:[%s404 + $0x98] sm:$0xff] %vm416, -inf
        %437 = vst.msk [vmem:[%s404 + $0xa0] sm:$0xff] %vm416, -inf
        %438 = vst.msk [vmem:[%s404 + $0xa8] sm:$0xff] %vm416, -inf
        %439 = vst.msk [vmem:[%s404 + $0xb0] sm:$0xff] %vm416, -inf
        %440 = vst.msk [vmem:[%s404 + $0xb8] sm:$0xff] %vm416, -inf
        %441 = vst.msk [vmem:[%s404 + $0xc0] sm:$0xff] %vm416, -inf
        %442 = vst.msk [vmem:[%s404 + $0xc8] sm:$0xff] %vm416, -inf
        %443 = vst.msk [vmem:[%s404 + $0xd0] sm:$0xff] %vm416, -inf
        %444 = vst.msk [vmem:[%s404 + $0xd8] sm:$0xff] %vm416, -inf
        %445 = vst.msk [vmem:[%s404 + $0xe0] sm:$0xff] %vm416, -inf
        %446 = vst.msk [vmem:[%s404 + $0xe8] sm:$0xff] %vm416, -inf
        %447 = vst.msk [vmem:[%s404 + $0xf0] sm:$0xff] %vm416, -inf
        %448 = vst.msk [vmem:[%s404 + $0xf8] sm:$0xff] %vm416, -inf
        %449 = vst.msk [vmem:[%s410] sm:$0xff] %vm416, inf
        %450 = vst.msk [vmem:[%s410 + $0x8] sm:$0xff] %vm416, inf
        %451 = vst.msk [vmem:[%s410 + $0x10] sm:$0xff] %vm416, inf
        %452 = vst.msk [vmem:[%s410 + $0x18] sm:$0xff] %vm416, inf
        %453 = vst.msk [vmem:[%s410 + $0x20] sm:$0xff] %vm416, inf
        %454 = vst.msk [vmem:[%s410 + $0x28] sm:$0xff] %vm416, inf
        %455 = vst.msk [vmem:[%s410 + $0x30] sm:$0xff] %vm416, inf
        %456 = vst.msk [vmem:[%s410 + $0x38] sm:$0xff] %vm416, inf
        %457 = vst.msk [vmem:[%s410 + $0x40] sm:$0xff] %vm416, inf
        %458 = vst.msk [vmem:[%s410 + $0x48] sm:$0xff] %vm416, inf
        %459 = vst.msk [vmem:[%s410 + $0x50] sm:$0xff] %vm416, inf
        %460 = vst.msk [vmem:[%s410 + $0x58] sm:$0xff] %vm416, inf
        %461 = vst.msk [vmem:[%s410 + $0x60] sm:$0xff] %vm416, inf
        %462 = vst.msk [vmem:[%s410 + $0x68] sm:$0xff] %vm416, inf
        %463 = vst.msk [vmem:[%s410 + $0x70] sm:$0xff] %vm416, inf
        %464 = vst.msk [vmem:[%s410 + $0x78] sm:$0xff] %vm416, inf
        %465 = vst.msk [vmem:[%s410 + $0x80] sm:$0xff] %vm416, inf
        %466 = vst.msk [vmem:[%s410 + $0x88] sm:$0xff] %vm416, inf
        %467 = vst.msk [vmem:[%s410 + $0x90] sm:$0xff] %vm416, inf
        %468 = vst.msk [vmem:[%s410 + $0x98] sm:$0xff] %vm416, inf
        %469 = vst.msk [vmem:[%s410 + $0xa0] sm:$0xff] %vm416, inf
        %470 = vst.msk [vmem:[%s410 + $0xa8] sm:$0xff] %vm416, inf
        %471 = vst.msk [vmem:[%s410 + $0xb0] sm:$0xff] %vm416, inf
        %472 = vst.msk [vmem:[%s410 + $0xb8] sm:$0xff] %vm416, inf
        %473 = vst.msk [vmem:[%s410 + $0xc0] sm:$0xff] %vm416, inf
        %474 = vst.msk [vmem:[%s410 + $0xc8] sm:$0xff] %vm416, inf
        %475 = vst.msk [vmem:[%s410 + $0xd0] sm:$0xff] %vm416, inf
        %476 = vst.msk [vmem:[%s410 + $0xd8] sm:$0xff] %vm416, inf
        %477 = vst.msk [vmem:[%s410 + $0xe0] sm:$0xff] %vm416, inf
        %478 = vst.msk [vmem:[%s410 + $0xe8] sm:$0xff] %vm416, inf
        %479 = vst.msk [vmem:[%s410 + $0xf0] sm:$0xff] %vm416, inf
        %480 = vst.msk [vmem:[%s410 + $0xf8] sm:$0xff] %vm416, inf
      $region48: #{tpu_custom_call.1} parent=43 // pred_fallthru
        _
      %v481 = vld [vmem:[%s370] sm:$0xff]
      %v482 = vld [vmem:[%s370 + $0x8] sm:$0xff]
      %v483 = vld [vmem:[%s370 + $0x10] sm:$0xff]
      %v484 = vld [vmem:[%s370 + $0x18] sm:$0xff]
      %v485 = vld [vmem:[%s370 + $0x20] sm:$0xff]
      %v486 = vld [vmem:[%s370 + $0x28] sm:$0xff]
      %v487 = vld [vmem:[%s370 + $0x30] sm:$0xff]
      %v488 = vld [vmem:[%s370 + $0x38] sm:$0xff]
      %v489 = vld [vmem:[%s370 + $0x40] sm:$0xff]
      %v490 = vld [vmem:[%s370 + $0x48] sm:$0xff]
      %v491 = vld [vmem:[%s370 + $0x50] sm:$0xff]
      %v492 = vld [vmem:[%s370 + $0x58] sm:$0xff]
      %v493 = vld [vmem:[%s370 + $0x60] sm:$0xff]
      %v494 = vld [vmem:[%s370 + $0x68] sm:$0xff]
      %v495 = vld [vmem:[%s370 + $0x70] sm:$0xff]
      %v496 = vld [vmem:[%s370 + $0x78] sm:$0xff]
      %v497 = vld [vmem:[%s370 + $0x80] sm:$0xff]
      %v498 = vld [vmem:[%s370 + $0x88] sm:$0xff]
      %v499 = vld [vmem:[%s370 + $0x90] sm:$0xff]
      %v500 = vld [vmem:[%s370 + $0x98] sm:$0xff]
      %v501 = vld [vmem:[%s370 + $0xa0] sm:$0xff]
      %v502 = vld [vmem:[%s370 + $0xa8] sm:$0xff]
      %v503 = vld [vmem:[%s370 + $0xb0] sm:$0xff]
      %v504 = vld [vmem:[%s370 + $0xb8] sm:$0xff]
      %v505 = vld [vmem:[%s370 + $0xc0] sm:$0xff]
      %v506 = vld [vmem:[%s370 + $0xc8] sm:$0xff]
      %v507 = vld [vmem:[%s370 + $0xd0] sm:$0xff]
      %v508 = vld [vmem:[%s370 + $0xd8] sm:$0xff]
      %v509 = vld [vmem:[%s370 + $0xe0] sm:$0xff]
      %v510 = vld [vmem:[%s370 + $0xe8] sm:$0xff]
      %v511 = vld [vmem:[%s370 + $0xf0] sm:$0xff]
      %v512 = vld [vmem:[%s370 + $0xf8] sm:$0xff]
      %v513 = vld [vmem:[%s376] sm:$0xff]
      %v514 = vld [vmem:[%s376 + $0x8] sm:$0xff]
      %v515 = vld [vmem:[%s376 + $0x10] sm:$0xff]
      %v516 = vld [vmem:[%s376 + $0x18] sm:$0xff]
      %v517 = vld [vmem:[%s376 + $0x20] sm:$0xff]
      %v518 = vld [vmem:[%s376 + $0x28] sm:$0xff]
      %v519 = vld [vmem:[%s376 + $0x30] sm:$0xff]
      %v520 = vld [vmem:[%s376 + $0x38] sm:$0xff]
      %v521 = vld [vmem:[%s376 + $0x40] sm:$0xff]
      %v522 = vld [vmem:[%s376 + $0x48] sm:$0xff]
      %v523 = vld [vmem:[%s376 + $0x50] sm:$0xff]
      %v524 = vld [vmem:[%s376 + $0x58] sm:$0xff]
      %v525 = vld [vmem:[%s376 + $0x60] sm:$0xff]
      %v526 = vld [vmem:[%s376 + $0x68] sm:$0xff]
      %v527 = vld [vmem:[%s376 + $0x70] sm:$0xff]
      %v528 = vld [vmem:[%s376 + $0x78] sm:$0xff]
      %v529 = vld [vmem:[%s376 + $0x80] sm:$0xff]
      %v530 = vld [vmem:[%s376 + $0x88] sm:$0xff]
      %v531 = vld [vmem:[%s376 + $0x90] sm:$0xff]
      %v532 = vld [vmem:[%s376 + $0x98] sm:$0xff]
      %v533 = vld [vmem:[%s376 + $0xa0] sm:$0xff]
      %v534 = vld [vmem:[%s376 + $0xa8] sm:$0xff]
      %v535 = vld [vmem:[%s376 + $0xb0] sm:$0xff]
      %v536 = vld [vmem:[%s376 + $0xb8] sm:$0xff]
      %v537 = vld [vmem:[%s376 + $0xc0] sm:$0xff]
      %v538 = vld [vmem:[%s376 + $0xc8] sm:$0xff]
      %v539 = vld [vmem:[%s376 + $0xd0] sm:$0xff]
      %v540 = vld [vmem:[%s376 + $0xd8] sm:$0xff]
      %v541 = vld [vmem:[%s376 + $0xe0] sm:$0xff]
      %v542 = vld [vmem:[%s376 + $0xe8] sm:$0xff]
      %v543 = vld [vmem:[%s376 + $0xf0] sm:$0xff]
      %v544 = vld [vmem:[%s376 + $0xf8] sm:$0xff]
      %vm545 = vcmask 523264
      %v547 = vsel %vm545, %v481, 0
      %v550 = vsel %vm545, %v482, 0
      %v553 = vsel %vm545, %v483, 0
      %v556 = vsel %vm545, %v484, 0
      %v559 = vsel %vm545, %v485, 0
      %v562 = vsel %vm545, %v486, 0
      %v565 = vsel %vm545, %v487, 0
      %v568 = vsel %vm545, %v488, 0
      %v571 = vsel %vm545, %v489, 0
      %v574 = vsel %vm545, %v490, 0
      %v577 = vsel %vm545, %v491, 0
      %v580 = vsel %vm545, %v492, 0
      %v583 = vsel %vm545, %v493, 0
      %v586 = vsel %vm545, %v494, 0
      %v589 = vsel %vm545, %v495, 0
      %v592 = vsel %vm545, %v496, 0
      %v595 = vsel %vm545, %v497, 0
      %v598 = vsel %vm545, %v498, 0
      %v601 = vsel %vm545, %v499, 0
      %v604 = vsel %vm545, %v500, 0
      %v607 = vsel %vm545, %v501, 0
      %v610 = vsel %vm545, %v502, 0
      %v613 = vsel %vm545, %v503, 0
      %v616 = vsel %vm545, %v504, 0
      %v619 = vsel %vm545, %v505, 0
      %v622 = vsel %vm545, %v506, 0
      %v625 = vsel %vm545, %v507, 0
      %v628 = vsel %vm545, %v508, 0
      %v631 = vsel %vm545, %v509, 0
      %v634 = vsel %vm545, %v510, 0
      %v637 = vsel %vm545, %v511, 0
      %v640 = vsel %vm545, %v512, 0
      %v643 = vsel %vm545, %v513, 0
      %v646 = vsel %vm545, %v514, 0
      %v649 = vsel %vm545, %v515, 0
      %v652 = vsel %vm545, %v516, 0
      %v655 = vsel %vm545, %v517, 0
      %v658 = vsel %vm545, %v518, 0
      %v661 = vsel %vm545, %v519, 0
      %v664 = vsel %vm545, %v520, 0
      %v667 = vsel %vm545, %v521, 0
      %v670 = vsel %vm545, %v522, 0
      %v673 = vsel %vm545, %v523, 0
      %v676 = vsel %vm545, %v524, 0
      %v679 = vsel %vm545, %v525, 0
      %v682 = vsel %vm545, %v526, 0
      %v685 = vsel %vm545, %v527, 0
      %v688 = vsel %vm545, %v528, 0
      %v691 = vsel %vm545, %v529, 0
      %v694 = vsel %vm545, %v530, 0
      %v697 = vsel %vm545, %v531, 0
      %v700 = vsel %vm545, %v532, 0
      %v703 = vsel %vm545, %v533, 0
      %v706 = vsel %vm545, %v534, 0
      %v709 = vsel %vm545, %v535, 0
      %v712 = vsel %vm545, %v536, 0
      %v715 = vsel %vm545, %v537, 0
      %v718 = vsel %vm545, %v538, 0
      %v721 = vsel %vm545, %v539, 0
      %v724 = vsel %vm545, %v540, 0
      %v727 = vsel %vm545, %v541, 0
      %v730 = vsel %vm545, %v542, 0
      %v733 = vsel %vm545, %v543, 0
      %v736 = vsel %vm545, %v544, 0
      %738 = vmatprep.subr.mxu0 0.0
      %739 = vmatpush1.xpose.msra.mxu0 %v643
      %740 = vmatprep.subr.mxu0 0.0
      %741 = vmatpush1.xpose.msra.mxu0 %v646
      %742 = vmatprep.subr.mxu0 0.0
      %743 = vmatpush1.xpose.msra.mxu0 %v649
      %744 = vmatprep.subr.mxu0 0.0
      %745 = vmatpush1.xpose.msra.mxu0 %v652
      %746 = vmatprep.subr.mxu0 0.0
      %747 = vmatpush1.xpose.msra.mxu0 %v655
      %748 = vmatprep.subr.mxu0 0.0
      %749 = vmatpush1.xpose.msra.mxu0 %v658
      %750 = vmatprep.subr.mxu0 0.0
      %751 = vmatpush1.xpose.msra.mxu0 %v661
      %752 = vmatprep.subr.mxu0 0.0
      %753 = vmatpush1.xpose.msra.mxu0 %v664
      %754 = vmatprep.subr.mxu0 0.0
      %755 = vmatpush1.xpose.msra.mxu0 %v667
      %756 = vmatprep.subr.mxu0 0.0
      %757 = vmatpush1.xpose.msra.mxu0 %v670
      %758 = vmatprep.subr.mxu0 0.0
      %759 = vmatpush1.xpose.msra.mxu0 %v673
      %760 = vmatprep.subr.mxu0 0.0
      %761 = vmatpush1.xpose.msra.mxu0 %v676
      %762 = vmatprep.subr.mxu0 0.0
      %763 = vmatpush1.xpose.msra.mxu0 %v679
      %764 = vmatprep.subr.mxu0 0.0
      %765 = vmatpush1.xpose.msra.mxu0 %v682
      %766 = vmatprep.subr.mxu0 0.0
      %767 = vmatpush1.xpose.msra.mxu0 %v685
      %768 = vmatprep.subr.mxu0 0.0
      %769 = vmatpush1.xpose.msra.mxu0 %v688
      %770 = vmatprep.subr.mxu0 0.0
      %771 = vmatpush1.xpose.msra.mxu0 %v691
      %772 = vmatprep.subr.mxu0 0.0
      %773 = vmatpush1.xpose.msra.mxu0 %v694
      %774 = vmatprep.subr.mxu0 0.0
      %775 = vmatpush1.xpose.msra.mxu0 %v697
      %776 = vmatprep.subr.mxu0 0.0
      %777 = vmatpush1.xpose.msra.mxu0 %v700
      %778 = vmatprep.subr.mxu0 0.0
      %779 = vmatpush1.xpose.msra.mxu0 %v703
      %780 = vmatprep.subr.mxu0 0.0
      %781 = vmatpush1.xpose.msra.mxu0 %v706
      %782 = vmatprep.subr.mxu0 0.0
      %783 = vmatpush1.xpose.msra.mxu0 %v709
      %784 = vmatprep.subr.mxu0 0.0
      %785 = vmatpush1.xpose.msra.mxu0 %v712
      %786 = vmatprep.subr.mxu0 0.0
      %787 = vmatpush1.xpose.msra.mxu0 %v715
      %788 = vmatprep.subr.mxu0 0.0
      %789 = vmatpush1.xpose.msra.mxu0 %v718
      %790 = vmatprep.subr.mxu0 0.0
      %791 = vmatpush1.xpose.msra.mxu0 %v721
      %792 = vmatprep.subr.mxu0 0.0
      %793 = vmatpush1.xpose.msra.mxu0 %v724
      %794 = vmatprep.subr.mxu0 0.0
      %795 = vmatpush1.xpose.msra.mxu0 %v727
      %796 = vmatprep.subr.mxu0 0.0
      %797 = vmatpush1.xpose.msra.mxu0 %v730
      %798 = vmatprep.subr.mxu0 0.0
      %799 = vmatpush1.xpose.msra.mxu0 %v733
      %800 = vmatprep.subr.mxu0 0.0
      %801 = vmatpush1.xpose.msra.mxu0 %v736
      %802 = vmatprep.mubr.f32.mxu0 0.0
      %803 = vmatmul.mubr.f32.gmra.mrb[0].mxu0 %v547
      %v804 = vpop.f32.mrb[0].mxu0
      %v805 = vadd.f32 0.0, %v804
      %v806 = vpop.f32.mrb[0].mxu0
      %v807 = vadd.f32 0.0, %v806
      %808 = vmatprep.mubr.f32.mxu0 0.0
      %809 = vmatmul.mubr.f32.gmra.mrb[0].mxu0 %v550
      %v810 = vpop.f32.mrb[0].mxu0
      %v811 = vadd.f32 0.0, %v810
      %v812 = vpop.f32.mrb[0].mxu0
      %v813 = vadd.f32 0.0, %v812
      %814 = vmatprep.mubr.f32.mxu0 0.0
      %815 = vmatmul.mubr.f32.gmra.mrb[0].mxu0 %v553
      %v816 = vpop.f32.mrb[0].mxu0
      %v817 = vadd.f32 0.0, %v816
      %v818 = vpop.f32.mrb[0].mxu0
      %v819 = vadd.f32 0.0, %v818
      %820 = vmatprep.mubr.f32.mxu0 0.0
      %821 = vmatmul.mubr.f32.gmra.mrb[0].mxu0 %v556
      %v822 = vpop.f32.mrb[0].mxu0
      %v823 = vadd.f32 0.0, %v822
      %v824 = vpop.f32.mrb[0].mxu0
      %v825 = vadd.f32 0.0, %v824
      %826 = vmatprep.mubr.f32.mxu0 0.0
      %827 = vmatmul.mubr.f32.gmra.mrb[0].mxu0 %v559
      %v828 = vpop.f32.mrb[0].mxu0
      %v829 = vadd.f32 0.0, %v828
      %v830 = vpop.f32.mrb[0].mxu0
      %v831 = vadd.f32 0.0, %v830
      %832 = vmatprep.mubr.f32.mxu0 0.0
      %833 = vmatmul.mubr.f32.gmra.mrb[0].mxu0 %v562
      %v834 = vpop.f32.mrb[0].mxu0
      %v835 = vadd.f32 0.0, %v834
      %v836 = vpop.f32.mrb[0].mxu0
      %v837 = vadd.f32 0.0, %v836
      %838 = vmatprep.mubr.f32.mxu0 0.0
      %839 = vmatmul.mubr.f32.gmra.mrb[0].mxu0 %v565
      %v840 = vpop.f32.mrb[0].mxu0
      %v841 = vadd.f32 0.0, %v840
      %v842 = vpop.f32.mrb[0].mxu0
      %v843 = vadd.f32 0.0, %v842
      %844 = vmatprep.mubr.f32.mxu0 0.0
      %845 = vmatmul.mubr.f32.gmra.mrb[0].mxu0 %v568
      %v846 = vpop.f32.mrb[0].mxu0
      %v847 = vadd.f32 0.0, %v846
      %v848 = vpop.f32.mrb[0].mxu0
      %v849 = vadd.f32 0.0, %v848
      %850 = vmatprep.mubr.f32.mxu0 0.0
      %851 = vmatmul.mubr.f32.gmra.mrb[0].mxu0 %v571
      %v852 = vpop.f32.mrb[0].mxu0
      %v853 = vadd.f32 0.0, %v852
      %v854 = vpop.f32.mrb[0].mxu0
      %v855 = vadd.f32 0.0, %v854
      %856 = vmatprep.mubr.f32.mxu0 0.0
      %857 = vmatmul.mubr.f32.gmra.mrb[0].mxu0 %v574
      %v858 = vpop.f32.mrb[0].mxu0
      %v859 = vadd.f32 0.0, %v858
      %v860 = vpop.f32.mrb[0].mxu0
      %v861 = vadd.f32 0.0, %v860
      %862 = vmatprep.mubr.f32.mxu0 0.0
      %863 = vmatmul.mubr.f32.gmra.mrb[0].mxu0 %v577
      %v864 = vpop.f32.mrb[0].mxu0
      %v865 = vadd.f32 0.0, %v864
      %v866 = vpop.f32.mrb[0].mxu0
      %v867 = vadd.f32 0.0, %v866
      %868 = vmatprep.mubr.f32.mxu0 0.0
      %869 = vmatmul.mubr.f32.gmra.mrb[0].mxu0 %v580
      %v870 = vpop.f32.mrb[0].mxu0
      %v871 = vadd.f32 0.0, %v870
      %v872 = vpop.f32.mrb[0].mxu0
      %v873 = vadd.f32 0.0, %v872
      %874 = vmatprep.mubr.f32.mxu0 0.0
      %875 = vmatmul.mubr.f32.gmra.mrb[0].mxu0 %v583
      %v876 = vpop.f32.mrb[0].mxu0
      %v877 = vadd.f32 0.0, %v876
      %v878 = vpop.f32.mrb[0].mxu0
      %v879 = vadd.f32 0.0, %v878
      %880 = vmatprep.mubr.f32.mxu0 0.0
      %881 = vmatmul.mubr.f32.gmra.mrb[0].mxu0 %v586
      %v882 = vpop.f32.mrb[0].mxu0
      %v883 = vadd.f32 0.0, %v882
      %v884 = vpop.f32.mrb[0].mxu0
      %v885 = vadd.f32 0.0, %v884
      %886 = vmatprep.mubr.f32.mxu0 0.0
      %887 = vmatmul.mubr.f32.gmra.mrb[0].mxu0 %v589
      %v888 = vpop.f32.mrb[0].mxu0
      %v889 = vadd.f32 0.0, %v888
      %v890 = vpop.f32.mrb[0].mxu0
      %v891 = vadd.f32 0.0, %v890
      %892 = vmatprep.mubr.f32.mxu0 0.0
      %893 = vmatmul.mubr.f32.gmra.mrb[0].mxu0 %v592
      %v894 = vpop.f32.mrb[0].mxu0
      %v895 = vadd.f32 0.0, %v894
      %v896 = vpop.f32.mrb[0].mxu0
      %v897 = vadd.f32 0.0, %v896
      %898 = vmatprep.mubr.f32.mxu0 0.0
      %899 = vmatmul.mubr.f32.gmra.mrb[0].mxu0 %v595
      %v900 = vpop.f32.mrb[0].mxu0
      %v901 = vadd.f32 0.0, %v900
      %v902 = vpop.f32.mrb[0].mxu0
      %v903 = vadd.f32 0.0, %v902
      %904 = vmatprep.mubr.f32.mxu0 0.0
      %905 = vmatmul.mubr.f32.gmra.mrb[0].mxu0 %v598
      %v906 = vpop.f32.mrb[0].mxu0
      %v907 = vadd.f32 0.0, %v906
      %v908 = vpop.f32.mrb[0].mxu0
      %v909 = vadd.f32 0.0, %v908
      %910 = vmatprep.mubr.f32.mxu0 0.0
      %911 = vmatmul.mubr.f32.gmra.mrb[0].mxu0 %v601
      %v912 = vpop.f32.mrb[0].mxu0
      %v913 = vadd.f32 0.0, %v912
      %v914 = vpop.f32.mrb[0].mxu0
      %v915 = vadd.f32 0.0, %v914
      %916 = vmatprep.mubr.f32.mxu0 0.0
      %917 = vmatmul.mubr.f32.gmra.mrb[0].mxu0 %v604
      %v918 = vpop.f32.mrb[0].mxu0
      %v919 = vadd.f32 0.0, %v918
      %v920 = vpop.f32.mrb[0].mxu0
      %v921 = vadd.f32 0.0, %v920
      %922 = vmatprep.mubr.f32.mxu0 0.0
      %923 = vmatmul.mubr.f32.gmra.mrb[0].mxu0 %v607
      %v924 = vpop.f32.mrb[0].mxu0
      %v925 = vadd.f32 0.0, %v924
      %v926 = vpop.f32.mrb[0].mxu0
      %v927 = vadd.f32 0.0, %v926
      %928 = vmatprep.mubr.f32.mxu0 0.0
      %929 = vmatmul.mubr.f32.gmra.mrb[0].mxu0 %v610
      %v930 = vpop.f32.mrb[0].mxu0
      %v931 = vadd.f32 0.0, %v930
      %v932 = vpop.f32.mrb[0].mxu0
      %v933 = vadd.f32 0.0, %v932
      %934 = vmatprep.mubr.f32.mxu0 0.0
      %935 = vmatmul.mubr.f32.gmra.mrb[0].mxu0 %v613
      %v936 = vpop.f32.mrb[0].mxu0
      %v937 = vadd.f32 0.0, %v936
      %v938 = vpop.f32.mrb[0].mxu0
      %v939 = vadd.f32 0.0, %v938
      %940 = vmatprep.mubr.f32.mxu0 0.0
      %941 = vmatmul.mubr.f32.gmra.mrb[0].mxu0 %v616
      %v942 = vpop.f32.mrb[0].mxu0
      %v943 = vadd.f32 0.0, %v942
      %v944 = vpop.f32.mrb[0].mxu0
      %v945 = vadd.f32 0.0, %v944
      %946 = vmatprep.mubr.f32.mxu0 0.0
      %947 = vmatmul.mubr.f32.gmra.mrb[0].mxu0 %v619
      %v948 = vpop.f32.mrb[0].mxu0
      %v949 = vadd.f32 0.0, %v948
      %v950 = vpop.f32.mrb[0].mxu0
      %v951 = vadd.f32 0.0, %v950
      %952 = vmatprep.mubr.f32.mxu0 0.0
      %953 = vmatmul.mubr.f32.gmra.mrb[0].mxu0 %v622
      %v954 = vpop.f32.mrb[0].mxu0
      %v955 = vadd.f32 0.0, %v954
      %v956 = vpop.f32.mrb[0].mxu0
      %v957 = vadd.f32 0.0, %v956
      %958 = vmatprep.mubr.f32.mxu0 0.0
      %959 = vmatmul.mubr.f32.gmra.mrb[0].mxu0 %v625
      %v960 = vpop.f32.mrb[0].mxu0
      %v961 = vadd.f32 0.0, %v960
      %v962 = vpop.f32.mrb[0].mxu0
      %v963 = vadd.f32 0.0, %v962
      %964 = vmatprep.mubr.f32.mxu0 0.0
      %965 = vmatmul.mubr.f32.gmra.mrb[0].mxu0 %v628
      %v966 = vpop.f32.mrb[0].mxu0
      %v967 = vadd.f32 0.0, %v966
      %v968 = vpop.f32.mrb[0].mxu0
      %v969 = vadd.f32 0.0, %v968
      %970 = vmatprep.mubr.f32.mxu0 0.0
      %971 = vmatmul.mubr.f32.gmra.mrb[0].mxu0 %v631
      %v972 = vpop.f32.mrb[0].mxu0
      %v973 = vadd.f32 0.0, %v972
      %v974 = vpop.f32.mrb[0].mxu0
      %v975 = vadd.f32 0.0, %v974
      %976 = vmatprep.mubr.f32.mxu0 0.0
      %977 = vmatmul.mubr.f32.gmra.mrb[0].mxu0 %v634
      %v978 = vpop.f32.mrb[0].mxu0
      %v979 = vadd.f32 0.0, %v978
      %v980 = vpop.f32.mrb[0].mxu0
      %v981 = vadd.f32 0.0, %v980
      %982 = vmatprep.mubr.f32.mxu0 0.0
      %983 = vmatmul.mubr.f32.gmra.mrb[0].mxu0 %v637
      %v984 = vpop.f32.mrb[0].mxu0
      %v985 = vadd.f32 0.0, %v984
      %v986 = vpop.f32.mrb[0].mxu0
      %v987 = vadd.f32 0.0, %v986
      %988 = vmatprep.mubr.f32.mxu0 0.0
      %989 = vmatmul.mubr.f32.gmra.mrb[0].mxu0 %v640
      %v990 = vpop.f32.mrb[0].mxu0
      %v991 = vadd.f32 0.0, %v990
      %v992 = vpop.f32.mrb[0].mxu0
      %v993 = vadd.f32 0.0, %v992
      %994 = vdwg.mxu0
      %v995 = vld [vmem:[%s382] sm:$0xff]
      %v996 = vld [vmem:[%s382 + $0x8] sm:$0xff]
      %v997 = vld [vmem:[%s382 + $0x10] sm:$0xff]
      %v998 = vld [vmem:[%s382 + $0x18] sm:$0xff]
      %v999 = vld [vmem:[%s382 + $0x20] sm:$0xff]
      %v1000 = vld [vmem:[%s382 + $0x28] sm:$0xff]
      %v1001 = vld [vmem:[%s382 + $0x30] sm:$0xff]
      %v1002 = vld [vmem:[%s382 + $0x38] sm:$0xff]
      %v1003 = vld [vmem:[%s382 + $0x40] sm:$0xff]
      %v1004 = vld [vmem:[%s382 + $0x48] sm:$0xff]
      %v1005 = vld [vmem:[%s382 + $0x50] sm:$0xff]
      %v1006 = vld [vmem:[%s382 + $0x58] sm:$0xff]
      %v1007 = vld [vmem:[%s382 + $0x60] sm:$0xff]
      %v1008 = vld [vmem:[%s382 + $0x68] sm:$0xff]
      %v1009 = vld [vmem:[%s382 + $0x70] sm:$0xff]
      %v1010 = vld [vmem:[%s382 + $0x78] sm:$0xff]
      %v1011 = vld [vmem:[%s382 + $0x80] sm:$0xff]
      %v1012 = vld [vmem:[%s382 + $0x88] sm:$0xff]
      %v1013 = vld [vmem:[%s382 + $0x90] sm:$0xff]
      %v1014 = vld [vmem:[%s382 + $0x98] sm:$0xff]
      %v1015 = vld [vmem:[%s382 + $0xa0] sm:$0xff]
      %v1016 = vld [vmem:[%s382 + $0xa8] sm:$0xff]
      %v1017 = vld [vmem:[%s382 + $0xb0] sm:$0xff]
      %v1018 = vld [vmem:[%s382 + $0xb8] sm:$0xff]
      %v1019 = vld [vmem:[%s382 + $0xc0] sm:$0xff]
      %v1020 = vld [vmem:[%s382 + $0xc8] sm:$0xff]
      %v1021 = vld [vmem:[%s382 + $0xd0] sm:$0xff]
      %v1022 = vld [vmem:[%s382 + $0xd8] sm:$0xff]
      %v1023 = vld [vmem:[%s382 + $0xe0] sm:$0xff]
      %v1024 = vld [vmem:[%s382 + $0xe8] sm:$0xff]
      %v1025 = vld [vmem:[%s382 + $0xf0] sm:$0xff]
      %v1026 = vld [vmem:[%s382 + $0xf8] sm:$0xff]
      %v1027 = vld [vmem:[%s387] sm:$0x3]
      %1029 = vset.pattern.permute.xlu0 0
      %1030 = vperm.xlu0 %1029, %v995
      %v1031 = vpop.permute.xlu0 %1030
      %1034 = vset.pattern.permute.xlu0 0
      %1035 = vperm.xlu0 %1034, %v996
      %v1036 = vpop.permute.xlu0 %1035
      %1039 = vset.pattern.permute.xlu0 0
      %1040 = vperm.xlu0 %1039, %v997
      %v1041 = vpop.permute.xlu0 %1040
      %1044 = vset.pattern.permute.xlu0 0
      %1045 = vperm.xlu0 %1044, %v998
      %v1046 = vpop.permute.xlu0 %1045
      %1049 = vset.pattern.permute.xlu0 0
      %1050 = vperm.xlu0 %1049, %v999
      %v1051 = vpop.permute.xlu0 %1050
      %1054 = vset.pattern.permute.xlu0 0
      %1055 = vperm.xlu0 %1054, %v1000
      %v1056 = vpop.permute.xlu0 %1055
      %1059 = vset.pattern.permute.xlu0 0
      %1060 = vperm.xlu0 %1059, %v1001
      %v1061 = vpop.permute.xlu0 %1060
      %1064 = vset.pattern.permute.xlu0 0
      %1065 = vperm.xlu0 %1064, %v1002
      %v1066 = vpop.permute.xlu0 %1065
      %1069 = vset.pattern.permute.xlu0 0
      %1070 = vperm.xlu0 %1069, %v1003
      %v1071 = vpop.permute.xlu0 %1070
      %1074 = vset.pattern.permute.xlu0 0
      %1075 = vperm.xlu0 %1074, %v1004
      %v1076 = vpop.permute.xlu0 %1075
      %1079 = vset.pattern.permute.xlu0 0
      %1080 = vperm.xlu0 %1079, %v1005
      %v1081 = vpop.permute.xlu0 %1080
      %1084 = vset.pattern.permute.xlu0 0
      %1085 = vperm.xlu0 %1084, %v1006
      %v1086 = vpop.permute.xlu0 %1085
      %1089 = vset.pattern.permute.xlu0 0
      %1090 = vperm.xlu0 %1089, %v1007
      %v1091 = vpop.permute.xlu0 %1090
      %1094 = vset.pattern.permute.xlu0 0
      %1095 = vperm.xlu0 %1094, %v1008
      %v1096 = vpop.permute.xlu0 %1095
      %1099 = vset.pattern.permute.xlu0 0
      %1100 = vperm.xlu0 %1099, %v1009
      %v1101 = vpop.permute.xlu0 %1100
      %1104 = vset.pattern.permute.xlu0 0
      %1105 = vperm.xlu0 %1104, %v1010
      %v1106 = vpop.permute.xlu0 %1105
      %1109 = vset.pattern.permute.xlu0 0
      %1110 = vperm.xlu0 %1109, %v1011
      %v1111 = vpop.permute.xlu0 %1110
      %1114 = vset.pattern.permute.xlu0 0
      %1115 = vperm.xlu0 %1114, %v1012
      %v1116 = vpop.permute.xlu0 %1115
      %1119 = vset.pattern.permute.xlu0 0
      %1120 = vperm.xlu0 %1119, %v1013
      %v1121 = vpop.permute.xlu0 %1120
      %1124 = vset.pattern.permute.xlu0 0
      %1125 = vperm.xlu0 %1124, %v1014
      %v1126 = vpop.permute.xlu0 %1125
      %1129 = vset.pattern.permute.xlu0 0
      %1130 = vperm.xlu0 %1129, %v1015
      %v1131 = vpop.permute.xlu0 %1130
      %1134 = vset.pattern.permute.xlu0 0
      %1135 = vperm.xlu0 %1134, %v1016
      %v1136 = vpop.permute.xlu0 %1135
      %1139 = vset.pattern.permute.xlu0 0
      %1140 = vperm.xlu0 %1139, %v1017
      %v1141 = vpop.permute.xlu0 %1140
      %1144 = vset.pattern.permute.xlu0 0
      %1145 = vperm.xlu0 %1144, %v1018
      %v1146 = vpop.permute.xlu0 %1145
      %1149 = vset.pattern.permute.xlu0 0
      %1150 = vperm.xlu0 %1149, %v1019
      %v1151 = vpop.permute.xlu0 %1150
      %1154 = vset.pattern.permute.xlu0 0
      %1155 = vperm.xlu0 %1154, %v1020
      %v1156 = vpop.permute.xlu0 %1155
      %1159 = vset.pattern.permute.xlu0 0
      %1160 = vperm.xlu0 %1159, %v1021
      %v1161 = vpop.permute.xlu0 %1160
      %1164 = vset.pattern.permute.xlu0 0
      %1165 = vperm.xlu0 %1164, %v1022
      %v1166 = vpop.permute.xlu0 %1165
      %1169 = vset.pattern.permute.xlu0 0
      %1170 = vperm.xlu0 %1169, %v1023
      %v1171 = vpop.permute.xlu0 %1170
      %1174 = vset.pattern.permute.xlu0 0
      %1175 = vperm.xlu0 %1174, %v1024
      %v1176 = vpop.permute.xlu0 %1175
      %1179 = vset.pattern.permute.xlu0 0
      %1180 = vperm.xlu0 %1179, %v1025
      %v1181 = vpop.permute.xlu0 %1180
      %1184 = vset.pattern.permute.xlu0 0
      %1185 = vperm.xlu0 %1184, %v1026
      %v1186 = vpop.permute.xlu0 %1185
      %v1189 = vlaneseq
      %v1190 = vshrl.u32 %v1189, 7
      %v1191 = vsub.s32 0, %v1190
      %v1192 = vrot.slane %v1027, %v1191
      %v1193 = vlaneseq
      %v1194 = vshrl.u32 %v1193, 7
      %v1195 = vsub.s32 1, %v1194
      %v1196 = vrot.slane %v1027, %v1195
      %v1199 = vadd.f32 %v1031, %v1192
      %v1200 = vadd.f32 %v1031, %v1196
      %v1201 = vadd.f32 %v1036, %v1192
      %v1202 = vadd.f32 %v1036, %v1196
      %v1203 = vadd.f32 %v1041, %v1192
      %v1204 = vadd.f32 %v1041, %v1196
      %v1205 = vadd.f32 %v1046, %v1192
      %v1206 = vadd.f32 %v1046, %v1196
      %v1207 = vadd.f32 %v1051, %v1192
      %v1208 = vadd.f32 %v1051, %v1196
      %v1209 = vadd.f32 %v1056, %v1192
      %v1210 = vadd.f32 %v1056, %v1196
      %v1211 = vadd.f32 %v1061, %v1192
      %v1212 = vadd.f32 %v1061, %v1196
      %v1213 = vadd.f32 %v1066, %v1192
      %v1214 = vadd.f32 %v1066, %v1196
      %v1215 = vadd.f32 %v1071, %v1192
      %v1216 = vadd.f32 %v1071, %v1196
      %v1217 = vadd.f32 %v1076, %v1192
      %v1218 = vadd.f32 %v1076, %v1196
      %v1219 = vadd.f32 %v1081, %v1192
      %v1220 = vadd.f32 %v1081, %v1196
      %v1221 = vadd.f32 %v1086, %v1192
      %v1222 = vadd.f32 %v1086, %v1196
      %v1223 = vadd.f32 %v1091, %v1192
      %v1224 = vadd.f32 %v1091, %v1196
      %v1225 = vadd.f32 %v1096, %v1192
      %v1226 = vadd.f32 %v1096, %v1196
      %v1227 = vadd.f32 %v1101, %v1192
      %v1228 = vadd.f32 %v1101, %v1196
      %v1229 = vadd.f32 %v1106, %v1192
      %v1230 = vadd.f32 %v1106, %v1196
      %v1231 = vadd.f32 %v1111, %v1192
      %v1232 = vadd.f32 %v1111, %v1196
      %v1233 = vadd.f32 %v1116, %v1192
      %v1234 = vadd.f32 %v1116, %v1196
      %v1235 = vadd.f32 %v1121, %v1192
      %v1236 = vadd.f32 %v1121, %v1196
      %v1237 = vadd.f32 %v1126, %v1192
      %v1238 = vadd.f32 %v1126, %v1196
      %v1239 = vadd.f32 %v1131, %v1192
      %v1240 = vadd.f32 %v1131, %v1196
      %v1241 = vadd.f32 %v1136, %v1192
      %v1242 = vadd.f32 %v1136, %v1196
      %v1243 = vadd.f32 %v1141, %v1192
      %v1244 = vadd.f32 %v1141, %v1196
      %v1245 = vadd.f32 %v1146, %v1192
      %v1246 = vadd.f32 %v1146, %v1196
      %v1247 = vadd.f32 %v1151, %v1192
      %v1248 = vadd.f32 %v1151, %v1196
      %v1249 = vadd.f32 %v1156, %v1192
      %v1250 = vadd.f32 %v1156, %v1196
      %v1251 = vadd.f32 %v1161, %v1192
      %v1252 = vadd.f32 %v1161, %v1196
      %v1253 = vadd.f32 %v1166, %v1192
      %v1254 = vadd.f32 %v1166, %v1196
      %v1255 = vadd.f32 %v1171, %v1192
      %v1256 = vadd.f32 %v1171, %v1196
      %v1257 = vadd.f32 %v1176, %v1192
      %v1258 = vadd.f32 %v1176, %v1196
      %v1259 = vadd.f32 %v1181, %v1192
      %v1260 = vadd.f32 %v1181, %v1196
      %v1261 = vadd.f32 %v1186, %v1192
      %v1262 = vadd.f32 %v1186, %v1196
      %v1263 = vmul.f32 %v805, 2.0
      %v1264 = vmul.f32 %v807, 2.0
      %v1265 = vmul.f32 %v811, 2.0
      %v1266 = vmul.f32 %v813, 2.0
      %v1267 = vmul.f32 %v817, 2.0
      %v1268 = vmul.f32 %v819, 2.0
      %v1269 = vmul.f32 %v823, 2.0
      %v1270 = vmul.f32 %v825, 2.0
      %v1271 = vmul.f32 %v829, 2.0
      %v1272 = vmul.f32 %v831, 2.0
      %v1273 = vmul.f32 %v835, 2.0
      %v1274 = vmul.f32 %v837, 2.0
      %v1275 = vmul.f32 %v841, 2.0
      %v1276 = vmul.f32 %v843, 2.0
      %v1277 = vmul.f32 %v847, 2.0
      %v1278 = vmul.f32 %v849, 2.0
      %v1279 = vmul.f32 %v853, 2.0
      %v1280 = vmul.f32 %v855, 2.0
      %v1281 = vmul.f32 %v859, 2.0
      %v1282 = vmul.f32 %v861, 2.0
      %v1283 = vmul.f32 %v865, 2.0
      %v1284 = vmul.f32 %v867, 2.0
      %v1285 = vmul.f32 %v871, 2.0
      %v1286 = vmul.f32 %v873, 2.0
      %v1287 = vmul.f32 %v877, 2.0
      %v1288 = vmul.f32 %v879, 2.0
      %v1289 = vmul.f32 %v883, 2.0
      %v1290 = vmul.f32 %v885, 2.0
      %v1291 = vmul.f32 %v889, 2.0
      %v1292 = vmul.f32 %v891, 2.0
      %v1293 = vmul.f32 %v895, 2.0
      %v1294 = vmul.f32 %v897, 2.0
      %v1295 = vmul.f32 %v901, 2.0
      %v1296 = vmul.f32 %v903, 2.0
      %v1297 = vmul.f32 %v907, 2.0
      %v1298 = vmul.f32 %v909, 2.0
      %v1299 = vmul.f32 %v913, 2.0
      %v1300 = vmul.f32 %v915, 2.0
      %v1301 = vmul.f32 %v919, 2.0
      %v1302 = vmul.f32 %v921, 2.0
      %v1303 = vmul.f32 %v925, 2.0
      %v1304 = vmul.f32 %v927, 2.0
      %v1305 = vmul.f32 %v931, 2.0
      %v1306 = vmul.f32 %v933, 2.0
      %v1307 = vmul.f32 %v937, 2.0
      %v1308 = vmul.f32 %v939, 2.0
      %v1309 = vmul.f32 %v943, 2.0
      %v1310 = vmul.f32 %v945, 2.0
      %v1311 = vmul.f32 %v949, 2.0
      %v1312 = vmul.f32 %v951, 2.0
      %v1313 = vmul.f32 %v955, 2.0
      %v1314 = vmul.f32 %v957, 2.0
      %v1315 = vmul.f32 %v961, 2.0
      %v1316 = vmul.f32 %v963, 2.0
      %v1317 = vmul.f32 %v967, 2.0
      %v1318 = vmul.f32 %v969, 2.0
      %v1319 = vmul.f32 %v973, 2.0
      %v1320 = vmul.f32 %v975, 2.0
      %v1321 = vmul.f32 %v979, 2.0
      %v1322 = vmul.f32 %v981, 2.0
      %v1323 = vmul.f32 %v985, 2.0
      %v1324 = vmul.f32 %v987, 2.0
      %v1325 = vmul.f32 %v991, 2.0
      %v1326 = vmul.f32 %v993, 2.0
      %v1327 = vsub.f32 %v1199, %v1263
      %v1328 = vsub.f32 %v1200, %v1264
      %v1329 = vsub.f32 %v1201, %v1265
      %v1330 = vsub.f32 %v1202, %v1266
      %v1331 = vsub.f32 %v1203, %v1267
      %v1332 = vsub.f32 %v1204, %v1268
      %v1333 = vsub.f32 %v1205, %v1269
      %v1334 = vsub.f32 %v1206, %v1270
      %v1335 = vsub.f32 %v1207, %v1271
      %v1336 = vsub.f32 %v1208, %v1272
      %v1337 = vsub.f32 %v1209, %v1273
      %v1338 = vsub.f32 %v1210, %v1274
      %v1339 = vsub.f32 %v1211, %v1275
      %v1340 = vsub.f32 %v1212, %v1276
      %v1341 = vsub.f32 %v1213, %v1277
      %v1342 = vsub.f32 %v1214, %v1278
      %v1343 = vsub.f32 %v1215, %v1279
      %v1344 = vsub.f32 %v1216, %v1280
      %v1345 = vsub.f32 %v1217, %v1281
      %v1346 = vsub.f32 %v1218, %v1282
      %v1347 = vsub.f32 %v1219, %v1283
      %v1348 = vsub.f32 %v1220, %v1284
      %v1349 = vsub.f32 %v1221, %v1285
      %v1350 = vsub.f32 %v1222, %v1286
      %v1351 = vsub.f32 %v1223, %v1287
      %v1352 = vsub.f32 %v1224, %v1288
      %v1353 = vsub.f32 %v1225, %v1289
      %v1354 = vsub.f32 %v1226, %v1290
      %v1355 = vsub.f32 %v1227, %v1291
      %v1356 = vsub.f32 %v1228, %v1292
      %v1357 = vsub.f32 %v1229, %v1293
      %v1358 = vsub.f32 %v1230, %v1294
      %v1359 = vsub.f32 %v1231, %v1295
      %v1360 = vsub.f32 %v1232, %v1296
      %v1361 = vsub.f32 %v1233, %v1297
      %v1362 = vsub.f32 %v1234, %v1298
      %v1363 = vsub.f32 %v1235, %v1299
      %v1364 = vsub.f32 %v1236, %v1300
      %v1365 = vsub.f32 %v1237, %v1301
      %v1366 = vsub.f32 %v1238, %v1302
      %v1367 = vsub.f32 %v1239, %v1303
      %v1368 = vsub.f32 %v1240, %v1304
      %v1369 = vsub.f32 %v1241, %v1305
      %v1370 = vsub.f32 %v1242, %v1306
      %v1371 = vsub.f32 %v1243, %v1307
      %v1372 = vsub.f32 %v1244, %v1308
      %v1373 = vsub.f32 %v1245, %v1309
      %v1374 = vsub.f32 %v1246, %v1310
      %v1375 = vsub.f32 %v1247, %v1311
      %v1376 = vsub.f32 %v1248, %v1312
      %v1377 = vsub.f32 %v1249, %v1313
      %v1378 = vsub.f32 %v1250, %v1314
      %v1379 = vsub.f32 %v1251, %v1315
      %v1380 = vsub.f32 %v1252, %v1316
      %v1381 = vsub.f32 %v1253, %v1317
      %v1382 = vsub.f32 %v1254, %v1318
      %v1383 = vsub.f32 %v1255, %v1319
      %v1384 = vsub.f32 %v1256, %v1320
      %v1385 = vsub.f32 %v1257, %v1321
      %v1386 = vsub.f32 %v1258, %v1322
      %v1387 = vsub.f32 %v1259, %v1323
      %v1388 = vsub.f32 %v1260, %v1324
      %v1389 = vsub.f32 %v1261, %v1325
      %v1390 = vsub.f32 %v1262, %v1326
      %v1391 = vld [vmem:[%s393] sm:$0xff]
      %v1392 = vld [vmem:[%s393 + $0x8] sm:$0xff]
      %v1393 = vld [vmem:[%s393 + $0x10] sm:$0xff]
      %v1394 = vld [vmem:[%s393 + $0x18] sm:$0xff]
      %v1395 = vld [vmem:[%s393 + $0x20] sm:$0xff]
      %v1396 = vld [vmem:[%s393 + $0x28] sm:$0xff]
      %v1397 = vld [vmem:[%s393 + $0x30] sm:$0xff]
      %v1398 = vld [vmem:[%s393 + $0x38] sm:$0xff]
      %v1399 = vld [vmem:[%s393 + $0x40] sm:$0xff]
      %v1400 = vld [vmem:[%s393 + $0x48] sm:$0xff]
      %v1401 = vld [vmem:[%s393 + $0x50] sm:$0xff]
      %v1402 = vld [vmem:[%s393 + $0x58] sm:$0xff]
      %v1403 = vld [vmem:[%s393 + $0x60] sm:$0xff]
      %v1404 = vld [vmem:[%s393 + $0x68] sm:$0xff]
      %v1405 = vld [vmem:[%s393 + $0x70] sm:$0xff]
      %v1406 = vld [vmem:[%s393 + $0x78] sm:$0xff]
      %v1407 = vld [vmem:[%s393 + $0x80] sm:$0xff]
      %v1408 = vld [vmem:[%s393 + $0x88] sm:$0xff]
      %v1409 = vld [vmem:[%s393 + $0x90] sm:$0xff]
      %v1410 = vld [vmem:[%s393 + $0x98] sm:$0xff]
      %v1411 = vld [vmem:[%s393 + $0xa0] sm:$0xff]
      %v1412 = vld [vmem:[%s393 + $0xa8] sm:$0xff]
      %v1413 = vld [vmem:[%s393 + $0xb0] sm:$0xff]
      %v1414 = vld [vmem:[%s393 + $0xb8] sm:$0xff]
      %v1415 = vld [vmem:[%s393 + $0xc0] sm:$0xff]
      %v1416 = vld [vmem:[%s393 + $0xc8] sm:$0xff]
      %v1417 = vld [vmem:[%s393 + $0xd0] sm:$0xff]
      %v1418 = vld [vmem:[%s393 + $0xd8] sm:$0xff]
      %v1419 = vld [vmem:[%s393 + $0xe0] sm:$0xff]
      %v1420 = vld [vmem:[%s393 + $0xe8] sm:$0xff]
      %v1421 = vld [vmem:[%s393 + $0xf0] sm:$0xff]
      %v1422 = vld [vmem:[%s393 + $0xf8] sm:$0xff]
      %v1423 = vld [vmem:[%s398] sm:$0x3]
      %1424 = vset.pattern.permute.xlu0 0
      %1425 = vperm.xlu0 %1424, %v1391
      %v1426 = vpop.permute.xlu0 %1425
      %1427 = vset.pattern.permute.xlu0 0
      %1428 = vperm.xlu0 %1427, %v1392
      %v1429 = vpop.permute.xlu0 %1428
      %1430 = vset.pattern.permute.xlu0 0
      %1431 = vperm.xlu0 %1430, %v1393
      %v1432 = vpop.permute.xlu0 %1431
      %1433 = vset.pattern.permute.xlu0 0
      %1434 = vperm.xlu0 %1433, %v1394
      %v1435 = vpop.permute.xlu0 %1434
      %1436 = vset.pattern.permute.xlu0 0
      %1437 = vperm.xlu0 %1436, %v1395
      %v1438 = vpop.permute.xlu0 %1437
      %1439 = vset.pattern.permute.xlu0 0
      %1440 = vperm.xlu0 %1439, %v1396
      %v1441 = vpop.permute.xlu0 %1440
      %1442 = vset.pattern.permute.xlu0 0
      %1443 = vperm.xlu0 %1442, %v1397
      %v1444 = vpop.permute.xlu0 %1443
      %1445 = vset.pattern.permute.xlu0 0
      %1446 = vperm.xlu0 %1445, %v1398
      %v1447 = vpop.permute.xlu0 %1446
      %1448 = vset.pattern.permute.xlu0 0
      %1449 = vperm.xlu0 %1448, %v1399
      %v1450 = vpop.permute.xlu0 %1449
      %1451 = vset.pattern.permute.xlu0 0
      %1452 = vperm.xlu0 %1451, %v1400
      %v1453 = vpop.permute.xlu0 %1452
      %1454 = vset.pattern.permute.xlu0 0
      %1455 = vperm.xlu0 %1454, %v1401
      %v1456 = vpop.permute.xlu0 %1455
      %1457 = vset.pattern.permute.xlu0 0
      %1458 = vperm.xlu0 %1457, %v1402
      %v1459 = vpop.permute.xlu0 %1458
      %1460 = vset.pattern.permute.xlu0 0
      %1461 = vperm.xlu0 %1460, %v1403
      %v1462 = vpop.permute.xlu0 %1461
      %1463 = vset.pattern.permute.xlu0 0
      %1464 = vperm.xlu0 %1463, %v1404
      %v1465 = vpop.permute.xlu0 %1464
      %1466 = vset.pattern.permute.xlu0 0
      %1467 = vperm.xlu0 %1466, %v1405
      %v1468 = vpop.permute.xlu0 %1467
      %1469 = vset.pattern.permute.xlu0 0
      %1470 = vperm.xlu0 %1469, %v1406
      %v1471 = vpop.permute.xlu0 %1470
      %1472 = vset.pattern.permute.xlu0 0
      %1473 = vperm.xlu0 %1472, %v1407
      %v1474 = vpop.permute.xlu0 %1473
      %1475 = vset.pattern.permute.xlu0 0
      %1476 = vperm.xlu0 %1475, %v1408
      %v1477 = vpop.permute.xlu0 %1476
      %1478 = vset.pattern.permute.xlu0 0
      %1479 = vperm.xlu0 %1478, %v1409
      %v1480 = vpop.permute.xlu0 %1479
      %1481 = vset.pattern.permute.xlu0 0
      %1482 = vperm.xlu0 %1481, %v1410
      %v1483 = vpop.permute.xlu0 %1482
      %1484 = vset.pattern.permute.xlu0 0
      %1485 = vperm.xlu0 %1484, %v1411
      %v1486 = vpop.permute.xlu0 %1485
      %1487 = vset.pattern.permute.xlu0 0
      %1488 = vperm.xlu0 %1487, %v1412
      %v1489 = vpop.permute.xlu0 %1488
      %1490 = vset.pattern.permute.xlu0 0
      %1491 = vperm.xlu0 %1490, %v1413
      %v1492 = vpop.permute.xlu0 %1491
      %1493 = vset.pattern.permute.xlu0 0
      %1494 = vperm.xlu0 %1493, %v1414
      %v1495 = vpop.permute.xlu0 %1494
      %1496 = vset.pattern.permute.xlu0 0
      %1497 = vperm.xlu0 %1496, %v1415
      %v1498 = vpop.permute.xlu0 %1497
      %1499 = vset.pattern.permute.xlu0 0
      %1500 = vperm.xlu0 %1499, %v1416
      %v1501 = vpop.permute.xlu0 %1500
      %1502 = vset.pattern.permute.xlu0 0
      %1503 = vperm.xlu0 %1502, %v1417
      %v1504 = vpop.permute.xlu0 %1503
      %1505 = vset.pattern.permute.xlu0 0
      %1506 = vperm.xlu0 %1505, %v1418
      %v1507 = vpop.permute.xlu0 %1506
      %1508 = vset.pattern.permute.xlu0 0
      %1509 = vperm.xlu0 %1508, %v1419
      %v1510 = vpop.permute.xlu0 %1509
      %1511 = vset.pattern.permute.xlu0 0
      %1512 = vperm.xlu0 %1511, %v1420
      %v1513 = vpop.permute.xlu0 %1512
      %1514 = vset.pattern.permute.xlu0 0
      %1515 = vperm.xlu0 %1514, %v1421
      %v1516 = vpop.permute.xlu0 %1515
      %1517 = vset.pattern.permute.xlu0 0
      %1518 = vperm.xlu0 %1517, %v1422
      %v1519 = vpop.permute.xlu0 %1518
      %v1520 = vlaneseq
      %v1521 = vshrl.u32 %v1520, 7
      %v1522 = vsub.s32 0, %v1521
      %v1523 = vrot.slane %v1423, %v1522
      %v1524 = vlaneseq
      %v1525 = vshrl.u32 %v1524, 7
      %v1526 = vsub.s32 1, %v1525
      %v1527 = vrot.slane %v1423, %v1526
      %vm1528 = vcmp.eq.s32.totalorder %v1426, %v1523
      %vm1529 = vcmp.eq.s32.totalorder %v1426, %v1527
      %vm1530 = vcmp.eq.s32.totalorder %v1429, %v1523
      %vm1531 = vcmp.eq.s32.totalorder %v1429, %v1527
      %vm1532 = vcmp.eq.s32.totalorder %v1432, %v1523
      %vm1533 = vcmp.eq.s32.totalorder %v1432, %v1527
      %vm1534 = vcmp.eq.s32.totalorder %v1435, %v1523
      %vm1535 = vcmp.eq.s32.totalorder %v1435, %v1527
      %vm1536 = vcmp.eq.s32.totalorder %v1438, %v1523
      %vm1537 = vcmp.eq.s32.totalorder %v1438, %v1527
      %vm1538 = vcmp.eq.s32.totalorder %v1441, %v1523
      %vm1539 = vcmp.eq.s32.totalorder %v1441, %v1527
      %vm1540 = vcmp.eq.s32.totalorder %v1444, %v1523
      %vm1541 = vcmp.eq.s32.totalorder %v1444, %v1527
      %vm1542 = vcmp.eq.s32.totalorder %v1447, %v1523
      %vm1543 = vcmp.eq.s32.totalorder %v1447, %v1527
      %vm1544 = vcmp.eq.s32.totalorder %v1450, %v1523
      %vm1545 = vcmp.eq.s32.totalorder %v1450, %v1527
      %vm1546 = vcmp.eq.s32.totalorder %v1453, %v1523
      %vm1547 = vcmp.eq.s32.totalorder %v1453, %v1527
      %vm1548 = vcmp.eq.s32.totalorder %v1456, %v1523
      %vm1549 = vcmp.eq.s32.totalorder %v1456, %v1527
      %vm1550 = vcmp.eq.s32.totalorder %v1459, %v1523
      %vm1551 = vcmp.eq.s32.totalorder %v1459, %v1527
      %vm1552 = vcmp.eq.s32.totalorder %v1462, %v1523
      %vm1553 = vcmp.eq.s32.totalorder %v1462, %v1527
      %vm1554 = vcmp.eq.s32.totalorder %v1465, %v1523
      %vm1555 = vcmp.eq.s32.totalorder %v1465, %v1527
      %vm1556 = vcmp.eq.s32.totalorder %v1468, %v1523
      %vm1557 = vcmp.eq.s32.totalorder %v1468, %v1527
      %vm1558 = vcmp.eq.s32.totalorder %v1471, %v1523
      %vm1559 = vcmp.eq.s32.totalorder %v1471, %v1527
      %vm1560 = vcmp.eq.s32.totalorder %v1474, %v1523
      %vm1561 = vcmp.eq.s32.totalorder %v1474, %v1527
      %vm1562 = vcmp.eq.s32.totalorder %v1477, %v1523
      %vm1563 = vcmp.eq.s32.totalorder %v1477, %v1527
      %vm1564 = vcmp.eq.s32.totalorder %v1480, %v1523
      %vm1565 = vcmp.eq.s32.totalorder %v1480, %v1527
      %vm1566 = vcmp.eq.s32.totalorder %v1483, %v1523
      %vm1567 = vcmp.eq.s32.totalorder %v1483, %v1527
      %vm1568 = vcmp.eq.s32.totalorder %v1486, %v1523
      %vm1569 = vcmp.eq.s32.totalorder %v1486, %v1527
      %vm1570 = vcmp.eq.s32.totalorder %v1489, %v1523
      %vm1571 = vcmp.eq.s32.totalorder %v1489, %v1527
      %vm1572 = vcmp.eq.s32.totalorder %v1492, %v1523
      %vm1573 = vcmp.eq.s32.totalorder %v1492, %v1527
      %vm1574 = vcmp.eq.s32.totalorder %v1495, %v1523
      %vm1575 = vcmp.eq.s32.totalorder %v1495, %v1527
      %vm1576 = vcmp.eq.s32.totalorder %v1498, %v1523
      %vm1577 = vcmp.eq.s32.totalorder %v1498, %v1527
      %vm1578 = vcmp.eq.s32.totalorder %v1501, %v1523
      %vm1579 = vcmp.eq.s32.totalorder %v1501, %v1527
      %vm1580 = vcmp.eq.s32.totalorder %v1504, %v1523
      %vm1581 = vcmp.eq.s32.totalorder %v1504, %v1527
      %vm1582 = vcmp.eq.s32.totalorder %v1507, %v1523
      %vm1583 = vcmp.eq.s32.totalorder %v1507, %v1527
      %vm1584 = vcmp.eq.s32.totalorder %v1510, %v1523
      %vm1585 = vcmp.eq.s32.totalorder %v1510, %v1527
      %vm1586 = vcmp.eq.s32.totalorder %v1513, %v1523
      %vm1587 = vcmp.eq.s32.totalorder %v1513, %v1527
      %vm1588 = vcmp.eq.s32.totalorder %v1516, %v1523
      %vm1589 = vcmp.eq.s32.totalorder %v1516, %v1527
      %vm1590 = vcmp.eq.s32.totalorder %v1519, %v1523
      %vm1591 = vcmp.eq.s32.totalorder %v1519, %v1527
      %v1592 = vsel %vm1528, %v1327, -inf
      %v1593 = vsel %vm1529, %v1328, -inf
      %v1594 = vsel %vm1530, %v1329, -inf
      %v1595 = vsel %vm1531, %v1330, -inf
      %v1596 = vsel %vm1532, %v1331, -inf
      %v1597 = vsel %vm1533, %v1332, -inf
      %v1598 = vsel %vm1534, %v1333, -inf
      %v1599 = vsel %vm1535, %v1334, -inf
      %v1600 = vsel %vm1536, %v1335, -inf
      %v1601 = vsel %vm1537, %v1336, -inf
      %v1602 = vsel %vm1538, %v1337, -inf
      %v1603 = vsel %vm1539, %v1338, -inf
      %v1604 = vsel %vm1540, %v1339, -inf
      %v1605 = vsel %vm1541, %v1340, -inf
      %v1606 = vsel %vm1542, %v1341, -inf
      %v1607 = vsel %vm1543, %v1342, -inf
      %v1608 = vsel %vm1544, %v1343, -inf
      %v1609 = vsel %vm1545, %v1344, -inf
      %v1610 = vsel %vm1546, %v1345, -inf
      %v1611 = vsel %vm1547, %v1346, -inf
      %v1612 = vsel %vm1548, %v1347, -inf
      %v1613 = vsel %vm1549, %v1348, -inf
      %v1614 = vsel %vm1550, %v1349, -inf
      %v1615 = vsel %vm1551, %v1350, -inf
      %v1616 = vsel %vm1552, %v1351, -inf
      %v1617 = vsel %vm1553, %v1352, -inf
      %v1618 = vsel %vm1554, %v1353, -inf
      %v1619 = vsel %vm1555, %v1354, -inf
      %v1620 = vsel %vm1556, %v1355, -inf
      %v1621 = vsel %vm1557, %v1356, -inf
      %v1622 = vsel %vm1558, %v1357, -inf
      %v1623 = vsel %vm1559, %v1358, -inf
      %v1624 = vsel %vm1560, %v1359, -inf
      %v1625 = vsel %vm1561, %v1360, -inf
      %v1626 = vsel %vm1562, %v1361, -inf
      %v1627 = vsel %vm1563, %v1362, -inf
      %v1628 = vsel %vm1564, %v1363, -inf
      %v1629 = vsel %vm1565, %v1364, -inf
      %v1630 = vsel %vm1566, %v1365, -inf
      %v1631 = vsel %vm1567, %v1366, -inf
      %v1632 = vsel %vm1568, %v1367, -inf
      %v1633 = vsel %vm1569, %v1368, -inf
      %v1634 = vsel %vm1570, %v1369, -inf
      %v1635 = vsel %vm1571, %v1370, -inf
      %v1636 = vsel %vm1572, %v1371, -inf
      %v1637 = vsel %vm1573, %v1372, -inf
      %v1638 = vsel %vm1574, %v1373, -inf
      %v1639 = vsel %vm1575, %v1374, -inf
      %v1640 = vsel %vm1576, %v1375, -inf
      %v1641 = vsel %vm1577, %v1376, -inf
      %v1642 = vsel %vm1578, %v1377, -inf
      %v1643 = vsel %vm1579, %v1378, -inf
      %v1644 = vsel %vm1580, %v1379, -inf
      %v1645 = vsel %vm1581, %v1380, -inf
      %v1646 = vsel %vm1582, %v1381, -inf
      %v1647 = vsel %vm1583, %v1382, -inf
      %v1648 = vsel %vm1584, %v1383, -inf
      %v1649 = vsel %vm1585, %v1384, -inf
      %v1650 = vsel %vm1586, %v1385, -inf
      %v1651 = vsel %vm1587, %v1386, -inf
      %v1652 = vsel %vm1588, %v1387, -inf
      %v1653 = vsel %vm1589, %v1388, -inf
      %v1654 = vsel %vm1590, %v1389, -inf
      %v1655 = vsel %vm1591, %v1390, -inf
      %v1656 = vmax.f32 %v1592, %v1593
      %1657 = vmax.xlane.f32.xlu0 %v1656
      %v1658 = vpop.xlane.xlu0 %1657
      %v1659 = vmax.f32 %v1594, %v1595
      %1660 = vmax.xlane.f32.xlu0 %v1659
      %v1661 = vpop.xlane.xlu0 %1660
      %v1662 = vmax.f32 %v1596, %v1597
      %1663 = vmax.xlane.f32.xlu0 %v1662
      %v1664 = vpop.xlane.xlu0 %1663
      %v1665 = vmax.f32 %v1598, %v1599
      %1666 = vmax.xlane.f32.xlu0 %v1665
      %v1667 = vpop.xlane.xlu0 %1666
      %v1668 = vmax.f32 %v1600, %v1601
      %1669 = vmax.xlane.f32.xlu0 %v1668
      %v1670 = vpop.xlane.xlu0 %1669
      %v1671 = vmax.f32 %v1602, %v1603
      %1672 = vmax.xlane.f32.xlu0 %v1671
      %v1673 = vpop.xlane.xlu0 %1672
      %v1674 = vmax.f32 %v1604, %v1605
      %1675 = vmax.xlane.f32.xlu0 %v1674
      %v1676 = vpop.xlane.xlu0 %1675
      %v1677 = vmax.f32 %v1606, %v1607
      %1678 = vmax.xlane.f32.xlu0 %v1677
      %v1679 = vpop.xlane.xlu0 %1678
      %v1680 = vmax.f32 %v1608, %v1609
      %1681 = vmax.xlane.f32.xlu0 %v1680
      %v1682 = vpop.xlane.xlu0 %1681
      %v1683 = vmax.f32 %v1610, %v1611
      %1684 = vmax.xlane.f32.xlu0 %v1683
      %v1685 = vpop.xlane.xlu0 %1684
      %v1686 = vmax.f32 %v1612, %v1613
      %1687 = vmax.xlane.f32.xlu0 %v1686
      %v1688 = vpop.xlane.xlu0 %1687
      %v1689 = vmax.f32 %v1614, %v1615
      %1690 = vmax.xlane.f32.xlu0 %v1689
      %v1691 = vpop.xlane.xlu0 %1690
      %v1692 = vmax.f32 %v1616, %v1617
      %1693 = vmax.xlane.f32.xlu0 %v1692
      %v1694 = vpop.xlane.xlu0 %1693
      %v1695 = vmax.f32 %v1618, %v1619
      %1696 = vmax.xlane.f32.xlu0 %v1695
      %v1697 = vpop.xlane.xlu0 %1696
      %v1698 = vmax.f32 %v1620, %v1621
      %1699 = vmax.xlane.f32.xlu0 %v1698
      %v1700 = vpop.xlane.xlu0 %1699
      %v1701 = vmax.f32 %v1622, %v1623
      %1702 = vmax.xlane.f32.xlu0 %v1701
      %v1703 = vpop.xlane.xlu0 %1702
      %v1704 = vmax.f32 %v1624, %v1625
      %1705 = vmax.xlane.f32.xlu0 %v1704
      %v1706 = vpop.xlane.xlu0 %1705
      %v1707 = vmax.f32 %v1626, %v1627
      %1708 = vmax.xlane.f32.xlu0 %v1707
      %v1709 = vpop.xlane.xlu0 %1708
      %v1710 = vmax.f32 %v1628, %v1629
      %1711 = vmax.xlane.f32.xlu0 %v1710
      %v1712 = vpop.xlane.xlu0 %1711
      %v1713 = vmax.f32 %v1630, %v1631
      %1714 = vmax.xlane.f32.xlu0 %v1713
      %v1715 = vpop.xlane.xlu0 %1714
      %v1716 = vmax.f32 %v1632, %v1633
      %1717 = vmax.xlane.f32.xlu0 %v1716
      %v1718 = vpop.xlane.xlu0 %1717
      %v1719 = vmax.f32 %v1634, %v1635
      %1720 = vmax.xlane.f32.xlu0 %v1719
      %v1721 = vpop.xlane.xlu0 %1720
      %v1722 = vmax.f32 %v1636, %v1637
      %1723 = vmax.xlane.f32.xlu0 %v1722
      %v1724 = vpop.xlane.xlu0 %1723
      %v1725 = vmax.f32 %v1638, %v1639
      %1726 = vmax.xlane.f32.xlu0 %v1725
      %v1727 = vpop.xlane.xlu0 %1726
      %v1728 = vmax.f32 %v1640, %v1641
      %1729 = vmax.xlane.f32.xlu0 %v1728
      %v1730 = vpop.xlane.xlu0 %1729
      %v1731 = vmax.f32 %v1642, %v1643
      %1732 = vmax.xlane.f32.xlu0 %v1731
      %v1733 = vpop.xlane.xlu0 %1732
      %v1734 = vmax.f32 %v1644, %v1645
      %1735 = vmax.xlane.f32.xlu0 %v1734
      %v1736 = vpop.xlane.xlu0 %1735
      %v1737 = vmax.f32 %v1646, %v1647
      %1738 = vmax.xlane.f32.xlu0 %v1737
      %v1739 = vpop.xlane.xlu0 %1738
      %v1740 = vmax.f32 %v1648, %v1649
      %1741 = vmax.xlane.f32.xlu0 %v1740
      %v1742 = vpop.xlane.xlu0 %1741
      %v1743 = vmax.f32 %v1650, %v1651
      %1744 = vmax.xlane.f32.xlu0 %v1743
      %v1745 = vpop.xlane.xlu0 %1744
      %v1746 = vmax.f32 %v1652, %v1653
      %1747 = vmax.xlane.f32.xlu0 %v1746
      %v1748 = vpop.xlane.xlu0 %1747
      %v1749 = vmax.f32 %v1654, %v1655
      %1750 = vmax.xlane.f32.xlu0 %v1749
      %v1751 = vpop.xlane.xlu0 %1750
      %v1752 = vsel %vm1528, inf, %v1327
      %v1753 = vsel %vm1529, inf, %v1328
      %v1754 = vsel %vm1530, inf, %v1329
      %v1755 = vsel %vm1531, inf, %v1330
      %v1756 = vsel %vm1532, inf, %v1331
      %v1757 = vsel %vm1533, inf, %v1332
      %v1758 = vsel %vm1534, inf, %v1333
      %v1759 = vsel %vm1535, inf, %v1334
      %v1760 = vsel %vm1536, inf, %v1335
      %v1761 = vsel %vm1537, inf, %v1336
      %v1762 = vsel %vm1538, inf, %v1337
      %v1763 = vsel %vm1539, inf, %v1338
      %v1764 = vsel %vm1540, inf, %v1339
      %v1765 = vsel %vm1541, inf, %v1340
      %v1766 = vsel %vm1542, inf, %v1341
      %v1767 = vsel %vm1543, inf, %v1342
      %v1768 = vsel %vm1544, inf, %v1343
      %v1769 = vsel %vm1545, inf, %v1344
      %v1770 = vsel %vm1546, inf, %v1345
      %v1771 = vsel %vm1547, inf, %v1346
      %v1772 = vsel %vm1548, inf, %v1347
      %v1773 = vsel %vm1549, inf, %v1348
      %v1774 = vsel %vm1550, inf, %v1349
      %v1775 = vsel %vm1551, inf, %v1350
      %v1776 = vsel %vm1552, inf, %v1351
      %v1777 = vsel %vm1553, inf, %v1352
      %v1778 = vsel %vm1554, inf, %v1353
      %v1779 = vsel %vm1555, inf, %v1354
      %v1780 = vsel %vm1556, inf, %v1355
      %v1781 = vsel %vm1557, inf, %v1356
      %v1782 = vsel %vm1558, inf, %v1357
      %v1783 = vsel %vm1559, inf, %v1358
      %v1784 = vsel %vm1560, inf, %v1359
      %v1785 = vsel %vm1561, inf, %v1360
      %v1786 = vsel %vm1562, inf, %v1361
      %v1787 = vsel %vm1563, inf, %v1362
      %v1788 = vsel %vm1564, inf, %v1363
      %v1789 = vsel %vm1565, inf, %v1364
      %v1790 = vsel %vm1566, inf, %v1365
      %v1791 = vsel %vm1567, inf, %v1366
      %v1792 = vsel %vm1568, inf, %v1367
      %v1793 = vsel %vm1569, inf, %v1368
      %v1794 = vsel %vm1570, inf, %v1369
      %v1795 = vsel %vm1571, inf, %v1370
      %v1796 = vsel %vm1572, inf, %v1371
      %v1797 = vsel %vm1573, inf, %v1372
      %v1798 = vsel %vm1574, inf, %v1373
      %v1799 = vsel %vm1575, inf, %v1374
      %v1800 = vsel %vm1576, inf, %v1375
      %v1801 = vsel %vm1577, inf, %v1376
      %v1802 = vsel %vm1578, inf, %v1377
      %v1803 = vsel %vm1579, inf, %v1378
      %v1804 = vsel %vm1580, inf, %v1379
      %v1805 = vsel %vm1581, inf, %v1380
      %v1806 = vsel %vm1582, inf, %v1381
      %v1807 = vsel %vm1583, inf, %v1382
      %v1808 = vsel %vm1584, inf, %v1383
      %v1809 = vsel %vm1585, inf, %v1384
      %v1810 = vsel %vm1586, inf, %v1385
      %v1811 = vsel %vm1587, inf, %v1386
      %v1812 = vsel %vm1588, inf, %v1387
      %v1813 = vsel %vm1589, inf, %v1388
      %v1814 = vsel %vm1590, inf, %v1389
      %v1815 = vsel %vm1591, inf, %v1390
      %v1816 = vmin.f32 %v1752, %v1753
      %1817 = vmin.xlane.f32.xlu0 %v1816
      %v1818 = vpop.xlane.xlu0 %1817
      %v1819 = vmin.f32 %v1754, %v1755
      %1820 = vmin.xlane.f32.xlu0 %v1819
      %v1821 = vpop.xlane.xlu0 %1820
      %v1822 = vmin.f32 %v1756, %v1757
      %1823 = vmin.xlane.f32.xlu0 %v1822
      %v1824 = vpop.xlane.xlu0 %1823
      %v1825 = vmin.f32 %v1758, %v1759
      %1826 = vmin.xlane.f32.xlu0 %v1825
      %v1827 = vpop.xlane.xlu0 %1826
      %v1828 = vmin.f32 %v1760, %v1761
      %1829 = vmin.xlane.f32.xlu0 %v1828
      %v1830 = vpop.xlane.xlu0 %1829
      %v1831 = vmin.f32 %v1762, %v1763
      %1832 = vmin.xlane.f32.xlu0 %v1831
      %v1833 = vpop.xlane.xlu0 %1832
      %v1834 = vmin.f32 %v1764, %v1765
      %1835 = vmin.xlane.f32.xlu0 %v1834
      %v1836 = vpop.xlane.xlu0 %1835
      %v1837 = vmin.f32 %v1766, %v1767
      %1838 = vmin.xlane.f32.xlu0 %v1837
      %v1839 = vpop.xlane.xlu0 %1838
      %v1840 = vmin.f32 %v1768, %v1769
      %1841 = vmin.xlane.f32.xlu0 %v1840
      %v1842 = vpop.xlane.xlu0 %1841
      %v1843 = vmin.f32 %v1770, %v1771
      %1844 = vmin.xlane.f32.xlu0 %v1843
      %v1845 = vpop.xlane.xlu0 %1844
      %v1846 = vmin.f32 %v1772, %v1773
      %1847 = vmin.xlane.f32.xlu0 %v1846
      %v1848 = vpop.xlane.xlu0 %1847
      %v1849 = vmin.f32 %v1774, %v1775
      %1850 = vmin.xlane.f32.xlu0 %v1849
      %v1851 = vpop.xlane.xlu0 %1850
      %v1852 = vmin.f32 %v1776, %v1777
      %1853 = vmin.xlane.f32.xlu0 %v1852
      %v1854 = vpop.xlane.xlu0 %1853
      %v1855 = vmin.f32 %v1778, %v1779
      %1856 = vmin.xlane.f32.xlu0 %v1855
      %v1857 = vpop.xlane.xlu0 %1856
      %v1858 = vmin.f32 %v1780, %v1781
      %1859 = vmin.xlane.f32.xlu0 %v1858
      %v1860 = vpop.xlane.xlu0 %1859
      %v1861 = vmin.f32 %v1782, %v1783
      %1862 = vmin.xlane.f32.xlu0 %v1861
      %v1863 = vpop.xlane.xlu0 %1862
      %v1864 = vmin.f32 %v1784, %v1785
      %1865 = vmin.xlane.f32.xlu0 %v1864
      %v1866 = vpop.xlane.xlu0 %1865
      %v1867 = vmin.f32 %v1786, %v1787
      %1868 = vmin.xlane.f32.xlu0 %v1867
      %v1869 = vpop.xlane.xlu0 %1868
      %v1870 = vmin.f32 %v1788, %v1789
      %1871 = vmin.xlane.f32.xlu0 %v1870
      %v1872 = vpop.xlane.xlu0 %1871
      %v1873 = vmin.f32 %v1790, %v1791
      %1874 = vmin.xlane.f32.xlu0 %v1873
      %v1875 = vpop.xlane.xlu0 %1874
      %v1876 = vmin.f32 %v1792, %v1793
      %1877 = vmin.xlane.f32.xlu0 %v1876
      %v1878 = vpop.xlane.xlu0 %1877
      %v1879 = vmin.f32 %v1794, %v1795
      %1880 = vmin.xlane.f32.xlu0 %v1879
      %v1881 = vpop.xlane.xlu0 %1880
      %v1882 = vmin.f32 %v1796, %v1797
      %1883 = vmin.xlane.f32.xlu0 %v1882
      %v1884 = vpop.xlane.xlu0 %1883
      %v1885 = vmin.f32 %v1798, %v1799
      %1886 = vmin.xlane.f32.xlu0 %v1885
      %v1887 = vpop.xlane.xlu0 %1886
      %v1888 = vmin.f32 %v1800, %v1801
      %1889 = vmin.xlane.f32.xlu0 %v1888
      %v1890 = vpop.xlane.xlu0 %1889
      %v1891 = vmin.f32 %v1802, %v1803
      %1892 = vmin.xlane.f32.xlu0 %v1891
      %v1893 = vpop.xlane.xlu0 %1892
      %v1894 = vmin.f32 %v1804, %v1805
      %1895 = vmin.xlane.f32.xlu0 %v1894
      %v1896 = vpop.xlane.xlu0 %1895
      %v1897 = vmin.f32 %v1806, %v1807
      %1898 = vmin.xlane.f32.xlu0 %v1897
      %v1899 = vpop.xlane.xlu0 %1898
      %v1900 = vmin.f32 %v1808, %v1809
      %1901 = vmin.xlane.f32.xlu0 %v1900
      %v1902 = vpop.xlane.xlu0 %1901
      %v1903 = vmin.f32 %v1810, %v1811
      %1904 = vmin.xlane.f32.xlu0 %v1903
      %v1905 = vpop.xlane.xlu0 %1904
      %v1906 = vmin.f32 %v1812, %v1813
      %1907 = vmin.xlane.f32.xlu0 %v1906
      %v1908 = vpop.xlane.xlu0 %1907
      %v1909 = vmin.f32 %v1814, %v1815
      %1910 = vmin.xlane.f32.xlu0 %v1909
      %v1911 = vpop.xlane.xlu0 %1910
      %v1912 = vld [vmem:[%s404] sm:$0xff]
      %v1913 = vld [vmem:[%s404 + $0x8] sm:$0xff]
      %v1914 = vld [vmem:[%s404 + $0x10] sm:$0xff]
      %v1915 = vld [vmem:[%s404 + $0x18] sm:$0xff]
      %v1916 = vld [vmem:[%s404 + $0x20] sm:$0xff]
      %v1917 = vld [vmem:[%s404 + $0x28] sm:$0xff]
      %v1918 = vld [vmem:[%s404 + $0x30] sm:$0xff]
      %v1919 = vld [vmem:[%s404 + $0x38] sm:$0xff]
      %v1920 = vld [vmem:[%s404 + $0x40] sm:$0xff]
      %v1921 = vld [vmem:[%s404 + $0x48] sm:$0xff]
      %v1922 = vld [vmem:[%s404 + $0x50] sm:$0xff]
      %v1923 = vld [vmem:[%s404 + $0x58] sm:$0xff]
      %v1924 = vld [vmem:[%s404 + $0x60] sm:$0xff]
      %v1925 = vld [vmem:[%s404 + $0x68] sm:$0xff]
      %v1926 = vld [vmem:[%s404 + $0x70] sm:$0xff]
      %v1927 = vld [vmem:[%s404 + $0x78] sm:$0xff]
      %v1928 = vld [vmem:[%s404 + $0x80] sm:$0xff]
      %v1929 = vld [vmem:[%s404 + $0x88] sm:$0xff]
      %v1930 = vld [vmem:[%s404 + $0x90] sm:$0xff]
      %v1931 = vld [vmem:[%s404 + $0x98] sm:$0xff]
      %v1932 = vld [vmem:[%s404 + $0xa0] sm:$0xff]
      %v1933 = vld [vmem:[%s404 + $0xa8] sm:$0xff]
      %v1934 = vld [vmem:[%s404 + $0xb0] sm:$0xff]
      %v1935 = vld [vmem:[%s404 + $0xb8] sm:$0xff]
      %v1936 = vld [vmem:[%s404 + $0xc0] sm:$0xff]
      %v1937 = vld [vmem:[%s404 + $0xc8] sm:$0xff]
      %v1938 = vld [vmem:[%s404 + $0xd0] sm:$0xff]
      %v1939 = vld [vmem:[%s404 + $0xd8] sm:$0xff]
      %v1940 = vld [vmem:[%s404 + $0xe0] sm:$0xff]
      %v1941 = vld [vmem:[%s404 + $0xe8] sm:$0xff]
      %v1942 = vld [vmem:[%s404 + $0xf0] sm:$0xff]
      %v1943 = vld [vmem:[%s404 + $0xf8] sm:$0xff]
      %v1944 = vmax.f32 %v1912, %v1658
      %v1945 = vmax.f32 %v1913, %v1661
      %v1946 = vmax.f32 %v1914, %v1664
      %v1947 = vmax.f32 %v1915, %v1667
      %v1948 = vmax.f32 %v1916, %v1670
      %v1949 = vmax.f32 %v1917, %v1673
      %v1950 = vmax.f32 %v1918, %v1676
      %v1951 = vmax.f32 %v1919, %v1679
      %v1952 = vmax.f32 %v1920, %v1682
      %v1953 = vmax.f32 %v1921, %v1685
      %v1954 = vmax.f32 %v1922, %v1688
      %v1955 = vmax.f32 %v1923, %v1691
      %v1956 = vmax.f32 %v1924, %v1694
      %v1957 = vmax.f32 %v1925, %v1697
      %v1958 = vmax.f32 %v1926, %v1700
      %v1959 = vmax.f32 %v1927, %v1703
      %v1960 = vmax.f32 %v1928, %v1706
      %v1961 = vmax.f32 %v1929, %v1709
      %v1962 = vmax.f32 %v1930, %v1712
      %v1963 = vmax.f32 %v1931, %v1715
      %v1964 = vmax.f32 %v1932, %v1718
      %v1965 = vmax.f32 %v1933, %v1721
      %v1966 = vmax.f32 %v1934, %v1724
      %v1967 = vmax.f32 %v1935, %v1727
      %v1968 = vmax.f32 %v1936, %v1730
      %v1969 = vmax.f32 %v1937, %v1733
      %v1970 = vmax.f32 %v1938, %v1736
      %v1971 = vmax.f32 %v1939, %v1739
      %v1972 = vmax.f32 %v1940, %v1742
      %v1973 = vmax.f32 %v1941, %v1745
      %v1974 = vmax.f32 %v1942, %v1748
      %v1975 = vmax.f32 %v1943, %v1751
      %vm1976 = vcmask 7168
      %1977 = vst.msk [vmem:[%s404] sm:$0xff] %vm1976, %v1944
      %1978 = vst.msk [vmem:[%s404 + $0x8] sm:$0xff] %vm1976, %v1945
      %1979 = vst.msk [vmem:[%s404 + $0x10] sm:$0xff] %vm1976, %v1946
      %1980 = vst.msk [vmem:[%s404 + $0x18] sm:$0xff] %vm1976, %v1947
      %1981 = vst.msk [vmem:[%s404 + $0x20] sm:$0xff] %vm1976, %v1948
      %1982 = vst.msk [vmem:[%s404 + $0x28] sm:$0xff] %vm1976, %v1949
      %1983 = vst.msk [vmem:[%s404 + $0x30] sm:$0xff] %vm1976, %v1950
      %1984 = vst.msk [vmem:[%s404 + $0x38] sm:$0xff] %vm1976, %v1951
      %1985 = vst.msk [vmem:[%s404 + $0x40] sm:$0xff] %vm1976, %v1952
      %1986 = vst.msk [vmem:[%s404 + $0x48] sm:$0xff] %vm1976, %v1953
      %1987 = vst.msk [vmem:[%s404 + $0x50] sm:$0xff] %vm1976, %v1954
      %1988 = vst.msk [vmem:[%s404 + $0x58] sm:$0xff] %vm1976, %v1955
      %1989 = vst.msk [vmem:[%s404 + $0x60] sm:$0xff] %vm1976, %v1956
      %1990 = vst.msk [vmem:[%s404 + $0x68] sm:$0xff] %vm1976, %v1957
      %1991 = vst.msk [vmem:[%s404 + $0x70] sm:$0xff] %vm1976, %v1958
      %1992 = vst.msk [vmem:[%s404 + $0x78] sm:$0xff] %vm1976, %v1959
      %1993 = vst.msk [vmem:[%s404 + $0x80] sm:$0xff] %vm1976, %v1960
      %1994 = vst.msk [vmem:[%s404 + $0x88] sm:$0xff] %vm1976, %v1961
      %1995 = vst.msk [vmem:[%s404 + $0x90] sm:$0xff] %vm1976, %v1962
      %1996 = vst.msk [vmem:[%s404 + $0x98] sm:$0xff] %vm1976, %v1963
      %1997 = vst.msk [vmem:[%s404 + $0xa0] sm:$0xff] %vm1976, %v1964
      %1998 = vst.msk [vmem:[%s404 + $0xa8] sm:$0xff] %vm1976, %v1965
      %1999 = vst.msk [vmem:[%s404 + $0xb0] sm:$0xff] %vm1976, %v1966
      %2000 = vst.msk [vmem:[%s404 + $0xb8] sm:$0xff] %vm1976, %v1967
      %2001 = vst.msk [vmem:[%s404 + $0xc0] sm:$0xff] %vm1976, %v1968
      %2002 = vst.msk [vmem:[%s404 + $0xc8] sm:$0xff] %vm1976, %v1969
      %2003 = vst.msk [vmem:[%s404 + $0xd0] sm:$0xff] %vm1976, %v1970
      %2004 = vst.msk [vmem:[%s404 + $0xd8] sm:$0xff] %vm1976, %v1971
      %2005 = vst.msk [vmem:[%s404 + $0xe0] sm:$0xff] %vm1976, %v1972
      %2006 = vst.msk [vmem:[%s404 + $0xe8] sm:$0xff] %vm1976, %v1973
      %2007 = vst.msk [vmem:[%s404 + $0xf0] sm:$0xff] %vm1976, %v1974
      %2008 = vst.msk [vmem:[%s404 + $0xf8] sm:$0xff] %vm1976, %v1975
      %v2009 = vld [vmem:[%s410] sm:$0xff]
      %v2010 = vld [vmem:[%s410 + $0x8] sm:$0xff]
      %v2011 = vld [vmem:[%s410 + $0x10] sm:$0xff]
      %v2012 = vld [vmem:[%s410 + $0x18] sm:$0xff]
      %v2013 = vld [vmem:[%s410 + $0x20] sm:$0xff]
      %v2014 = vld [vmem:[%s410 + $0x28] sm:$0xff]
      %v2015 = vld [vmem:[%s410 + $0x30] sm:$0xff]
      %v2016 = vld [vmem:[%s410 + $0x38] sm:$0xff]
      %v2017 = vld [vmem:[%s410 + $0x40] sm:$0xff]
      %v2018 = vld [vmem:[%s410 + $0x48] sm:$0xff]
      %v2019 = vld [vmem:[%s410 + $0x50] sm:$0xff]
      %v2020 = vld [vmem:[%s410 + $0x58] sm:$0xff]
      %v2021 = vld [vmem:[%s410 + $0x60] sm:$0xff]
      %v2022 = vld [vmem:[%s410 + $0x68] sm:$0xff]
      %v2023 = vld [vmem:[%s410 + $0x70] sm:$0xff]
      %v2024 = vld [vmem:[%s410 + $0x78] sm:$0xff]
      %v2025 = vld [vmem:[%s410 + $0x80] sm:$0xff]
      %v2026 = vld [vmem:[%s410 + $0x88] sm:$0xff]
      %v2027 = vld [vmem:[%s410 + $0x90] sm:$0xff]
      %v2028 = vld [vmem:[%s410 + $0x98] sm:$0xff]
      %v2029 = vld [vmem:[%s410 + $0xa0] sm:$0xff]
      %v2030 = vld [vmem:[%s410 + $0xa8] sm:$0xff]
      %v2031 = vld [vmem:[%s410 + $0xb0] sm:$0xff]
      %v2032 = vld [vmem:[%s410 + $0xb8] sm:$0xff]
      %v2033 = vld [vmem:[%s410 + $0xc0] sm:$0xff]
      %v2034 = vld [vmem:[%s410 + $0xc8] sm:$0xff]
      %v2035 = vld [vmem:[%s410 + $0xd0] sm:$0xff]
      %v2036 = vld [vmem:[%s410 + $0xd8] sm:$0xff]
      %v2037 = vld [vmem:[%s410 + $0xe0] sm:$0xff]
      %v2038 = vld [vmem:[%s410 + $0xe8] sm:$0xff]
      %v2039 = vld [vmem:[%s410 + $0xf0] sm:$0xff]
      %v2040 = vld [vmem:[%s410 + $0xf8] sm:$0xff]
      %v2041 = vmin.f32 %v2009, %v1818
      %v2042 = vmin.f32 %v2010, %v1821
      %v2043 = vmin.f32 %v2011, %v1824
      %v2044 = vmin.f32 %v2012, %v1827
      %v2045 = vmin.f32 %v2013, %v1830
      %v2046 = vmin.f32 %v2014, %v1833
      %v2047 = vmin.f32 %v2015, %v1836
      %v2048 = vmin.f32 %v2016, %v1839
      %v2049 = vmin.f32 %v2017, %v1842
      %v2050 = vmin.f32 %v2018, %v1845
      %v2051 = vmin.f32 %v2019, %v1848
      %v2052 = vmin.f32 %v2020, %v1851
      %v2053 = vmin.f32 %v2021, %v1854
      %v2054 = vmin.f32 %v2022, %v1857
      %v2055 = vmin.f32 %v2023, %v1860
      %v2056 = vmin.f32 %v2024, %v1863
      %v2057 = vmin.f32 %v2025, %v1866
      %v2058 = vmin.f32 %v2026, %v1869
      %v2059 = vmin.f32 %v2027, %v1872
      %v2060 = vmin.f32 %v2028, %v1875
      %v2061 = vmin.f32 %v2029, %v1878
      %v2062 = vmin.f32 %v2030, %v1881
      %v2063 = vmin.f32 %v2031, %v1884
      %v2064 = vmin.f32 %v2032, %v1887
      %v2065 = vmin.f32 %v2033, %v1890
      %v2066 = vmin.f32 %v2034, %v1893
      %v2067 = vmin.f32 %v2035, %v1896
      %v2068 = vmin.f32 %v2036, %v1899
      %v2069 = vmin.f32 %v2037, %v1902
      %v2070 = vmin.f32 %v2038, %v1905
      %v2071 = vmin.f32 %v2039, %v1908
      %v2072 = vmin.f32 %v2040, %v1911
      %2073 = vst.msk [vmem:[%s410] sm:$0xff] %vm1976, %v2041
      %2074 = vst.msk [vmem:[%s410 + $0x8] sm:$0xff] %vm1976, %v2042
      %2075 = vst.msk [vmem:[%s410 + $0x10] sm:$0xff] %vm1976, %v2043
      %2076 = vst.msk [vmem:[%s410 + $0x18] sm:$0xff] %vm1976, %v2044
      %2077 = vst.msk [vmem:[%s410 + $0x20] sm:$0xff] %vm1976, %v2045
      %2078 = vst.msk [vmem:[%s410 + $0x28] sm:$0xff] %vm1976, %v2046
      %2079 = vst.msk [vmem:[%s410 + $0x30] sm:$0xff] %vm1976, %v2047
      %2080 = vst.msk [vmem:[%s410 + $0x38] sm:$0xff] %vm1976, %v2048
      %2081 = vst.msk [vmem:[%s410 + $0x40] sm:$0xff] %vm1976, %v2049
      %2082 = vst.msk [vmem:[%s410 + $0x48] sm:$0xff] %vm1976, %v2050
      %2083 = vst.msk [vmem:[%s410 + $0x50] sm:$0xff] %vm1976, %v2051
      %2084 = vst.msk [vmem:[%s410 + $0x58] sm:$0xff] %vm1976, %v2052
      %2085 = vst.msk [vmem:[%s410 + $0x60] sm:$0xff] %vm1976, %v2053
      %2086 = vst.msk [vmem:[%s410 + $0x68] sm:$0xff] %vm1976, %v2054
      %2087 = vst.msk [vmem:[%s410 + $0x70] sm:$0xff] %vm1976, %v2055
      %2088 = vst.msk [vmem:[%s410 + $0x78] sm:$0xff] %vm1976, %v2056
      %2089 = vst.msk [vmem:[%s410 + $0x80] sm:$0xff] %vm1976, %v2057
      %2090 = vst.msk [vmem:[%s410 + $0x88] sm:$0xff] %vm1976, %v2058
      %2091 = vst.msk [vmem:[%s410 + $0x90] sm:$0xff] %vm1976, %v2059
      %2092 = vst.msk [vmem:[%s410 + $0x98] sm:$0xff] %vm1976, %v2060
      %2093 = vst.msk [vmem:[%s410 + $0xa0] sm:$0xff] %vm1976, %v2061
      %2094 = vst.msk [vmem:[%s410 + $0xa8] sm:$0xff] %vm1976, %v2062
      %2095 = vst.msk [vmem:[%s410 + $0xb0] sm:$0xff] %vm1976, %v2063
      %2096 = vst.msk [vmem:[%s410 + $0xb8] sm:$0xff] %vm1976, %v2064
      %2097 = vst.msk [vmem:[%s410 + $0xc0] sm:$0xff] %vm1976, %v2065
      %2098 = vst.msk [vmem:[%s410 + $0xc8] sm:$0xff] %vm1976, %v2066
      %2099 = vst.msk [vmem:[%s410 + $0xd0] sm:$0xff] %vm1976, %v2067
      %2100 = vst.msk [vmem:[%s410 + $0xd8] sm:$0xff] %vm1976, %v2068
      %2101 = vst.msk [vmem:[%s410 + $0xe0] sm:$0xff] %vm1976, %v2069
      %2102 = vst.msk [vmem:[%s410 + $0xe8] sm:$0xff] %vm1976, %v2070
      %2103 = vst.msk [vmem:[%s410 + $0xf0] sm:$0xff] %vm1976, %v2071
      %2104 = vst.msk [vmem:[%s410 + $0xf8] sm:$0xff] %vm1976, %v2072
      %s2105 = smul.u32 32, %s23
      %p2106 = scmp.lt.s32.totalorder %s2105, 63
      %s2107 = scalar_select %p2106, %s2105, 63
      %s2108 = smul.addr %s2107, 8
      %s2109 = scalar_lea.vmem %s6, %s2108
      %s2110 = smul.u32 32, %s23
      %p2111 = scmp.lt.s32.totalorder %s2110, 63
      %s2112 = scalar_select %p2111, %s2110, 63
      %s2113 = smul.addr %s2112, 8
      %s2114 = scalar_lea.vmem %s7, %s2113
      // Predicated region
      $region49: #{tpu_custom_call.1} parent=43 // pred_check
        %p2115 = pneg %p205
      $region50: #{tpu_custom_call.1} parent=43 // pred_check_branch
        %2117 = sbr.rel (%p2115) target = $region52
      $region51: #{tpu_custom_call.1} parent=43 // pred_region
        %s2118 = smul.u32 32, %s23
      $region52: #{tpu_custom_call.1} parent=43 // pred_fallthru
        _
      // Predicated region
      $region53: #{tpu_custom_call.1} parent=43 // pred_check
        %p2119 = pneg %p231
      $region54: #{tpu_custom_call.1} parent=43 // pred_check_branch
        %2121 = sbr.rel (%p2119) target = $region56
      $region55: #{tpu_custom_call.1} parent=43 // pred_region
        %s2122 = smul.u32 32, %s23
      $region56: #{tpu_custom_call.1} parent=43 // pred_fallthru
        _
    $region44: #{tpu_custom_call.1} parent=5 // pred_fallthru
      _
    %p2123 = scmp.le.s32.totalorder 2, %s14
    // Predicated region
    $region57: #{tpu_custom_call.1} parent=5 // pred_check
      %p2124 = pneg %p2123
    $region58: #{tpu_custom_call.1} parent=5 // pred_check_branch
      %2126 = sbr.rel (%p2124) target = $region60
    $region59: #{tpu_custom_call.1} parent=5 // pred_region
      %s2127 = ssub.s32 %s14, 2
      // Predicated region
      $region61: #{tpu_custom_call.1} parent=59 // pred_check
        %p2128 = pneg %p211
      $region62: #{tpu_custom_call.1} parent=59 // pred_check_branch
        %2130 = sbr.rel (%p2128) target = $region64
      $region63: #{tpu_custom_call.1} parent=59 // pred_region
        %s2131 = smul.u32 32, %s25
        %p2132 = scmp.lt.s32.totalorder %s2131, 63
        %s2133 = scalar_select %p2132, %s2131, 63
        %s2134 = smul.addr %s2133, 8
        %s2135 = scalar_lea.vmem %s6, %s2134
      $region64: #{tpu_custom_call.1} parent=59 // pred_fallthru
        _
      // Predicated region
      $region65: #{tpu_custom_call.1} parent=59 // pred_check
        %p2136 = pneg %p237
      $region66: #{tpu_custom_call.1} parent=59 // pred_check_branch
        %2138 = sbr.rel (%p2136) target = $region68
      $region67: #{tpu_custom_call.1} parent=59 // pred_region
        %s2139 = smul.u32 32, %s25
        %p2140 = scmp.lt.s32.totalorder %s2139, 63
        %s2141 = scalar_select %p2140, %s2139, 63
        %s2142 = smul.addr %s2141, 8
        %s2143 = scalar_lea.vmem %s7, %s2142
      $region68: #{tpu_custom_call.1} parent=59 // pred_fallthru
        _
    $region60: #{tpu_custom_call.1} parent=5 // pred_fallthru
      _
  $region6: #{tpu_custom_call.1} parent=0 // loop_footer
    %s18 = sadd.s32 1, %s14
  $region7: #{tpu_custom_call.1} parent=0 // loop_footer_branch
    %13 = sbr.rel target = $region3
  $region8: #{tpu_custom_call.1} parent=0 // loop_exit
    _

</llo_original>
